<compile_context>
chip_gen: v5e
topology: v5e:2x2
jax: 0.10.0
libtpu: 0.0.40
codegen_flags: <defaults>
</compile_context>

<pallas_src>
from functools import partial

import numpy as np
import jax
import jax.numpy as jnp
from jax import lax
from jax.experimental import pallas as pl
from jax.experimental.pallas import tpu as pltpu

EPS = 1e-5
VMEM_LIMIT = 32 * 1024 * 1024


# --------------------------------------------------------------------------
# host-side helpers (trace-time constants)
# --------------------------------------------------------------------------
def _make_tap_masks(H, W):
    """(9, H*W) f32 masks: masks[3*kh+kw, p] = 1 iff the (kh-1, kw-1) tap of
    output pixel p stays inside the image (also implements the zero padding
    and kills roll wrap-around / cross-row leakage)."""
    hh, ww = np.meshgrid(np.arange(H), np.arange(W), indexing="ij")
    hh = hh.reshape(-1)
    ww = ww.reshape(-1)
    masks = np.zeros((9, H * W), dtype=np.float32)
    for kh in range(3):
        for kw in range(3):
            dh, dw = kh - 1, kw - 1
            valid = ((hh + dh >= 0) & (hh + dh < H)
                     & (ww + dw >= 0) & (ww + dw < W))
            masks[3 * kh + kw] = valid.astype(np.float32)
    return jnp.asarray(masks)


# --------------------------------------------------------------------------
# Kernel 1: BN1 batch statistics (accumulated in VMEM, finalized in-kernel)
# --------------------------------------------------------------------------
def bn1_stats_kernel(x_ref, mean_ref, rstd_ref, sum_scr, sq_scr, sft_scr, *, count):
    """x_ref: (1, C, HW).  Outputs mean/rstd: (C, 1), written once at the end.
    Shifted-moment accumulation: d = x - x[:, 0 of image 0]."""
    n = pl.program_id(0)
    x = x_ref[0]                                            # (C, HW)

    @pl.when(n == 0)
    def _():
        sft_scr[...] = x[:, 0:1]
        sum_scr[...] = jnp.zeros_like(sum_scr)
        sq_scr[...] = jnp.zeros_like(sq_scr)

    d = x - sft_scr[...]
    sum_scr[...] += jnp.sum(d, axis=1, keepdims=True)
    sq_scr[...] += jnp.sum(d * d, axis=1, keepdims=True)

    @pl.when(n == pl.num_programs(0) - 1)
    def _():
        md = sum_scr[...] / count
        var = jnp.maximum(sq_scr[...] / count - md * md, 0.0)  # biased (training)
        mean_ref[...] = sft_scr[...] + md
        rstd_ref[...] = lax.rsqrt(var + EPS)


# --------------------------------------------------------------------------
# Kernel 2: fused  BN1+ReLU+1x1conv  (phase 0)  and  BN2+ReLU+3x3conv (phase 1)
# --------------------------------------------------------------------------
def fused_conv_kernel(x_ref, m1_ref, r1_ref, w1_ref, b1_ref, w2_ref, b2_ref,
                      mask_ref, o_ref,
                      y_scr, sum_scr, sq_scr, sft_scr, m2_scr, r2_scr,
                      *, H, W, count):
    """Grid = (2, N).  Phase 0: y = conv1x1(relu(bn1(x))) kept in VMEM scratch,
    BN2 shifted partial stats accumulated, mean2/rstd2 finalized at n == N-1.
    Phase 1: out = conv3x3(relu(bn2(y))) as ONE matmul of (G, 9*G_pad) with the
    roll+mask stacked (9*G_pad, HW) operand."""
    p = pl.program_id(0)
    n = pl.program_id(1)
    last = pl.num_programs(1) - 1
    HW = H * W

    @pl.when(p == 0)
    def _phase_1x1():
        x = x_ref[0]                                                  # (C, HW)
        h = jnp.maximum((x - m1_ref[...]) * r1_ref[...], 0.0)          # BN1+ReLU
        y = jnp.dot(w1_ref[...], h,
                    preferred_element_type=jnp.float32) + b1_ref[...]  # (G_pad, HW)
        y_scr[n] = y

        @pl.when(n == 0)
        def _():
            sft_scr[...] = y[:, 0:1]
            sum_scr[...] = jnp.zeros_like(sum_scr)
            sq_scr[...] = jnp.zeros_like(sq_scr)

        d = y - sft_scr[...]
        sum_scr[...] += jnp.sum(d, axis=1, keepdims=True)
        sq_scr[...] += jnp.sum(d * d, axis=1, keepdims=True)

        @pl.when(n == last)
        def _():
            md = sum_scr[...] / count
            var = jnp.maximum(sq_scr[...] / count - md * md, 0.0)
            m2_scr[...] = sft_scr[...] + md
            r2_scr[...] = lax.rsqrt(var + EPS)

    @pl.when(p == 1)
    def _phase_3x3():
        z = jnp.maximum((y_scr[n] - m2_scr[...]) * r2_scr[...], 0.0)   # (G_pad, HW)
        taps = []
        for kh in range(3):
            for kw in range(3):
                t = 3 * kh + kw
                s = (kh - 1) * W + (kw - 1)        # flat lane offset of this tap
                if s == 0:
                    taps.append(z)                 # center tap: mask is all-ones
                else:
                    zr = pltpu.roll(z, (-s) % HW, axis=1)   # zr[:, q] = z[:, q+s]
                    taps.append(zr * mask_ref[t:t + 1, :])  # mask kills wrap/pad
        stacked = jnp.concatenate(taps, axis=0)              # (9*G_pad, HW)
        out = jnp.dot(w2_ref[...], stacked,
                      preferred_element_type=jnp.float32) + b2_ref[...]
        o_ref[0] = out


# --------------------------------------------------------------------------
# Wrapper
# --------------------------------------------------------------------------
def bottleneck_forward(x_nchw, w1, b1, w2, b2):
    """x_nchw: (N, C, H, W) f32.  w1: (G, C, 1, 1), b1: (G,), w2: (G, G, 3, 3),
    b2: (G,)  (PyTorch OIHW).  Returns (N, G, H, W) f32."""
    N, C, H, W = x_nchw.shape
    G = w1.shape[0]
    HW = H * W
    count = float(N * HW)
    G_pad = ((G + 7) // 8) * 8          # sublane-align the intermediate channels

    # NCHW with flattened spatial IS the lane-dense layout -> free reshape only.
    x3 = x_nchw.reshape(N, C, HW).astype(jnp.float32)

    # 1x1 conv weights, padded to G_pad output rows (zeros -> padded y rows = 0).
    w1_mat = w1[:, :, 0, 0].astype(jnp.float32)                       # (G, C)
    w1_pad = jnp.pad(w1_mat, ((0, G_pad - G), (0, 0)))                # (G_pad, C)
    b1_pad = jnp.pad(b1.astype(jnp.float32).reshape(G, 1),
                     ((0, G_pad - G), (0, 0)))                        # (G_pad, 1)

    # 3x3 conv weights as one (G, 9*G_pad) matrix; column = t*G_pad + i, t = 3*kh+kw.
    w2_t = jnp.transpose(w2.astype(jnp.float32), (0, 2, 3, 1))        # (G, 3, 3, G)
    w2_t = jnp.pad(w2_t, ((0, 0), (0, 0), (0, 0), (0, G_pad - G)))    # (G, 3, 3, G_pad)
    w2_mat = w2_t.reshape(G, 9 * G_pad)
    b2_col = b2.astype(jnp.float32).reshape(G, 1)

    masks = _make_tap_masks(H, W)                                     # (9, HW)

    cparams1 = pltpu.CompilerParams(
        dimension_semantics=("arbitrary",),         # sequential: VMEM accumulator
        vmem_limit_bytes=VMEM_LIMIT,
    )
    cparams2 = pltpu.CompilerParams(
        dimension_semantics=("arbitrary", "arbitrary"),
        vmem_limit_bytes=VMEM_LIMIT,
    )

    # ---- pass 1: BN1 mean / rstd ---------------------------------------------
    mean1, rstd1 = pl.pallas_call(
        partial(bn1_stats_kernel, count=count),
        grid=(N,),
        in_specs=[pl.BlockSpec((1, C, HW), lambda n: (n, 0, 0))],
        out_specs=(pl.BlockSpec((C, 1), lambda n: (0, 0)),
                   pl.BlockSpec((C, 1), lambda n: (0, 0))),
        out_shape=(jax.ShapeDtypeStruct((C, 1), jnp.float32),
                   jax.ShapeDtypeStruct((C, 1), jnp.float32)),
        scratch_shapes=[pltpu.VMEM((C, 1), jnp.float32),
                        pltpu.VMEM((C, 1), jnp.float32),
                        pltpu.VMEM((C, 1), jnp.float32)],
        compiler_params=cparams1,
    )(x3)

    # ---- pass 2: fused BN1+ReLU+1x1conv and BN2+ReLU+3x3conv -------------------
    # x index_map: phase 0 reads image n, phase 1 pins block 0 (unused, resident).
    # out index_map: phase 0 pins block 0 (never written), phase 1 writes block n
    # -> no garbage writebacks and no output-block revisits.
    out3 = pl.pallas_call(
        partial(fused_conv_kernel, H=H, W=W, count=count),
        grid=(2, N),
        in_specs=[
            pl.BlockSpec((1, C, HW), lambda p, n: ((1 - p) * n, 0, 0)),
            pl.BlockSpec((C, 1), lambda p, n: (0, 0)),
            pl.BlockSpec((C, 1), lambda p, n: (0, 0)),
            pl.BlockSpec((G_pad, C), lambda p, n: (0, 0)),
            pl.BlockSpec((G_pad, 1), lambda p, n: (0, 0)),
            pl.BlockSpec((G, 9 * G_pad), lambda p, n: (0, 0)),
            pl.BlockSpec((G, 1), lambda p, n: (0, 0)),
            pl.BlockSpec((9, HW), lambda p, n: (0, 0)),
        ],
        out_specs=pl.BlockSpec((1, G, HW), lambda p, n: (p * n, 0, 0)),
        out_shape=jax.ShapeDtypeStruct((N, G, HW), jnp.float32),
        scratch_shapes=[
            pltpu.VMEM((N, G_pad, HW), jnp.float32),   # y, resident across grid
            pltpu.VMEM((G_pad, 1), jnp.float32),       # BN2 sum accumulator
            pltpu.VMEM((G_pad, 1), jnp.float32),       # BN2 sumsq accumulator
            pltpu.VMEM((G_pad, 1), jnp.float32),       # BN2 shift
            pltpu.VMEM((G_pad, 1), jnp.float32),       # mean2
            pltpu.VMEM((G_pad, 1), jnp.float32),       # rstd2
        ],
        compiler_params=cparams2,
    )(x3, mean1, rstd1, w1_pad, b1_pad, w2_mat, b2_col, masks)

    return out3.reshape(N, G, H, W)


# --------------------------------------------------------------------------
# Pure-JAX reference (for checking)
# --------------------------------------------------------------------------
def bottleneck_reference(x, w1, b1, w2, b2):
    def bn(h):
        mu = jnp.mean(h, axis=(0, 2, 3), keepdims=True)
        var = jnp.mean(jnp.square(h - mu), axis=(0, 2, 3), keepdims=True)
        return (h - mu) / jnp.sqrt(var + EPS)

    dn = ("NCHW", "OIHW", "NCHW")
    h = jnp.maximum(bn(x), 0.0)
    h = lax.conv_general_dilated(h, w1, (1, 1), "VALID", dimension_numbers=dn)
    h = h + b1.reshape(1, -1, 1, 1)
    h = jnp.maximum(bn(h), 0.0)
    h = lax.conv_general_dilated(h, w2, (1, 1), ((1, 1), (1, 1)), dimension_numbers=dn)
    return h + b2.reshape(1, -1, 1, 1)


# --------------------------------------------------------------------------
# Main
# --------------------------------------------------------------------------
if __name__ == "__main__":
    feature_map = 4
    growth_rate = 5
    N, H, W = 2, 16, 16

    key = jax.random.PRNGKey(0)
    kx, k1, k2, k3, k4 = jax.random.split(key, 5)

    x = jax.random.normal(kx, (N, feature_map, H, W), dtype=jnp.float32)
    w1 = 0.2 * jax.random.normal(k1, (growth_rate, feature_map, 1, 1), dtype=jnp.float32)
    b1 = 0.1 * jax.random.normal(k2, (growth_rate,), dtype=jnp.float32)
    w2 = 0.2 * jax.random.normal(k3, (growth_rate, growth_rate, 3, 3), dtype=jnp.float32)
    b2 = 0.1 * jax.random.normal(k4, (growth_rate,), dtype=jnp.float32)

    fwd = jax.jit(bottleneck_forward)
    out = jax.block_until_ready(fwd(x, w1, b1, w2, b2))
    assert out.shape == (N, growth_rate, H, W), out.shape

    ref = jax.block_until_ready(bottleneck_reference(x, w1, b1, w2, b2))
    err = float(jnp.max(jnp.abs(out - ref)))
    assert jnp.allclose(out, ref, atol=1e-3, rtol=1e-3), err

    print("KERNEL_OK")
</pallas_src>

<mosaic_0001>
module attributes {stable_mosaic.version = 11 : i64} {
  func.func @fused_conv_kernel(%arg0: i32, %arg1: i32, %arg2: memref<1x4x256xf32, #tpu.memory_space<vmem>>, %arg3: memref<4x1xf32, #tpu.memory_space<vmem>>, %arg4: memref<4x1xf32, #tpu.memory_space<vmem>>, %arg5: memref<8x4xf32, #tpu.memory_space<vmem>>, %arg6: memref<8x1xf32, #tpu.memory_space<vmem>>, %arg7: memref<5x72xf32, #tpu.memory_space<vmem>>, %arg8: memref<5x1xf32, #tpu.memory_space<vmem>>, %arg9: memref<9x256xf32, #tpu.memory_space<vmem>>, %arg10: memref<1x5x256xf32, #tpu.memory_space<vmem>>, %arg11: memref<2x8x256xf32, #tpu.memory_space<vmem>>, %arg12: memref<8x1xf32, #tpu.memory_space<vmem>>, %arg13: memref<8x1xf32, #tpu.memory_space<vmem>>, %arg14: memref<8x1xf32, #tpu.memory_space<vmem>>, %arg15: memref<8x1xf32, #tpu.memory_space<vmem>>, %arg16: memref<8x1xf32, #tpu.memory_space<vmem>>) attributes {dimension_semantics = [#tpu.dimension_semantics<arbitrary>, #tpu.dimension_semantics<arbitrary>], iteration_bounds = array<i64: 2, 2>, scalar_prefetch = 0 : i64, scratch_operands = 6 : i64, tpu.core_type = #tpu.core_type<tc>, window_params = [{transform_indices = @transform_0, window_bounds = array<i64: 1, 4, 256>}, {pipeline_mode = #tpu.pipeline_mode<synchronous>, transform_indices = @transform_1, window_bounds = array<i64: 4, 1>}, {pipeline_mode = #tpu.pipeline_mode<synchronous>, transform_indices = @transform_2, window_bounds = array<i64: 4, 1>}, {pipeline_mode = #tpu.pipeline_mode<synchronous>, transform_indices = @transform_3, window_bounds = array<i64: 8, 4>}, {pipeline_mode = #tpu.pipeline_mode<synchronous>, transform_indices = @transform_4, window_bounds = array<i64: 8, 1>}, {pipeline_mode = #tpu.pipeline_mode<synchronous>, transform_indices = @transform_5, window_bounds = array<i64: 5, 72>}, {pipeline_mode = #tpu.pipeline_mode<synchronous>, transform_indices = @transform_6, window_bounds = array<i64: 5, 1>}, {pipeline_mode = #tpu.pipeline_mode<synchronous>, transform_indices = @transform_7, window_bounds = array<i64: 9, 256>}, {transform_indices = @transform_8, window_bounds = array<i64: 1, 5, 256>}]} {
    %c0_i32 = arith.constant 0 : i32
    %0 = arith.cmpi eq, %arg0, %c0_i32 : i32
    %1 = arith.extui %0 : i1 to i32
    %c0_i32_0 = arith.constant 0 : i32
    %2 = arith.cmpi ne, %1, %c0_i32_0 : i32
    scf.if %2 {
      %c0 = arith.constant 0 : index
      %c0_2 = arith.constant 0 : index
      %c0_3 = arith.constant 0 : index
      %6 = vector.load %arg2[%c0, %c0_2, %c0_3] : memref<1x4x256xf32, #tpu.memory_space<vmem>>, vector<1x4x256xf32>
      %7 = vector.shape_cast %6 : vector<1x4x256xf32> to vector<4x256xf32>
      %c0_4 = arith.constant 0 : index
      %c0_5 = arith.constant 0 : index
      %8 = vector.load %arg3[%c0_4, %c0_5] : memref<4x1xf32, #tpu.memory_space<vmem>>, vector<4x1xf32>
      %9 = vector.broadcast %8 : vector<4x1xf32> to vector<4x256xf32>
      %10 = arith.subf %7, %9 : vector<4x256xf32>
      %c0_6 = arith.constant 0 : index
      %c0_7 = arith.constant 0 : index
      %11 = vector.load %arg4[%c0_6, %c0_7] : memref<4x1xf32, #tpu.memory_space<vmem>>, vector<4x1xf32>
      %12 = vector.broadcast %11 : vector<4x1xf32> to vector<4x256xf32>
      %13 = arith.mulf %10, %12 : vector<4x256xf32>
      %cst = arith.constant 0.000000e+00 : f32
      %14 = vector.broadcast %cst : f32 to vector<4x256xf32>
      %15 = arith.maximumf %13, %14 : vector<4x256xf32>
      %c0_8 = arith.constant 0 : index
      %c0_9 = arith.constant 0 : index
      %16 = vector.load %arg5[%c0_8, %c0_9] : memref<8x4xf32, #tpu.memory_space<vmem>>, vector<8x4xf32>
      %cst_10 = arith.constant dense<0.000000e+00> : vector<8x256xf32>
      %17 = tpu.matmul %16, %15, %cst_10 {dimension_numbers = #tpu.dot_dimension_numbers<[1], [0], [0], [1], [0, 0, 1, 1], [], []>} : vector<8x4xf32>, vector<4x256xf32>, vector<8x256xf32> -> vector<8x256xf32>
      %c0_11 = arith.constant 0 : index
      %c0_12 = arith.constant 0 : index
      %18 = vector.load %arg6[%c0_11, %c0_12] : memref<8x1xf32, #tpu.memory_space<vmem>>, vector<8x1xf32>
      %19 = vector.broadcast %18 : vector<8x1xf32> to vector<8x256xf32>
      %20 = arith.addf %17, %19 : vector<8x256xf32>
      %21 = arith.index_cast %arg1 : i32 to index
      %c0_13 = arith.constant 0 : index
      %c0_14 = arith.constant 0 : index
      %22 = vector.load %arg11[%21, %c0_13, %c0_14] : memref<2x8x256xf32, #tpu.memory_space<vmem>>, vector<1x8x256xf32>
      %23 = vector.shape_cast %22 : vector<1x8x256xf32> to vector<8x256xf32>
      %24 = vector.shape_cast %20 : vector<8x256xf32> to vector<1x8x256xf32>
      tpu.vector_store %arg11[%21, %c0_13, %c0_14], %24 {strides = array<i32>} : memref<2x8x256xf32, #tpu.memory_space<vmem>>, vector<1x8x256xf32>,
      %c0_i32_15 = arith.constant 0 : i32
      %25 = arith.cmpi eq, %arg1, %c0_i32_15 : i32
      %26 = arith.extui %25 : i1 to i32
      %c0_i32_16 = arith.constant 0 : i32
      %27 = arith.cmpi ne, %26, %c0_i32_16 : i32
      scf.if %27 {
        %45 = vector.extract_strided_slice %20 {offsets = [0, 0], sizes = [8, 1], strides = [1, 1]} : vector<8x256xf32> to vector<8x1xf32>
        %c0_31 = arith.constant 0 : index
        %c0_32 = arith.constant 0 : index
        %46 = vector.load %arg14[%c0_31, %c0_32] : memref<8x1xf32, #tpu.memory_space<vmem>>, vector<8x1xf32>
        tpu.vector_store %arg14[%c0_31, %c0_32], %45 {strides = array<i32>} : memref<8x1xf32, #tpu.memory_space<vmem>>, vector<8x1xf32>,
        %cst_33 = arith.constant 0.000000e+00 : f32
        %47 = vector.broadcast %cst_33 : f32 to vector<8x1xf32>
        %c0_34 = arith.constant 0 : index
        %c0_35 = arith.constant 0 : index
        %48 = vector.load %arg12[%c0_34, %c0_35] : memref<8x1xf32, #tpu.memory_space<vmem>>, vector<8x1xf32>
        tpu.vector_store %arg12[%c0_34, %c0_35], %47 {strides = array<i32>} : memref<8x1xf32, #tpu.memory_space<vmem>>, vector<8x1xf32>,
        %cst_36 = arith.constant 0.000000e+00 : f32
        %49 = vector.broadcast %cst_36 : f32 to vector<8x1xf32>
        %c0_37 = arith.constant 0 : index
        %c0_38 = arith.constant 0 : index
        %50 = vector.load %arg13[%c0_37, %c0_38] : memref<8x1xf32, #tpu.memory_space<vmem>>, vector<8x1xf32>
        tpu.vector_store %arg13[%c0_37, %c0_38], %49 {strides = array<i32>} : memref<8x1xf32, #tpu.memory_space<vmem>>, vector<8x1xf32>,
      } else {
      }
      %c0_17 = arith.constant 0 : index
      %c0_18 = arith.constant 0 : index
      %28 = vector.load %arg14[%c0_17, %c0_18] : memref<8x1xf32, #tpu.memory_space<vmem>>, vector<8x1xf32>
      %29 = vector.broadcast %28 : vector<8x1xf32> to vector<8x256xf32>
      %30 = arith.subf %20, %29 : vector<8x256xf32>
      %c0_19 = arith.constant 0 : index
      %c0_20 = arith.constant 0 : index
      %31 = vector.load %arg12[%c0_19, %c0_20] : memref<8x1xf32, #tpu.memory_space<vmem>>, vector<8x1xf32>
      %cst_21 = arith.constant dense<0.000000e+00> : vector<8xf32>
      %32 = vector.multi_reduction <add>, %30, %cst_21 [1] : vector<8x256xf32> to vector<8xf32>
      %33 = vector.shape_cast %32 : vector<8xf32> to vector<8x1xf32>
      %34 = arith.addf %31, %33 : vector<8x1xf32>
      %c0_22 = arith.constant 0 : index
      %c0_23 = arith.constant 0 : index
      %35 = vector.load %arg12[%c0_22, %c0_23] : memref<8x1xf32, #tpu.memory_space<vmem>>, vector<8x1xf32>
      tpu.vector_store %arg12[%c0_22, %c0_23], %34 {strides = array<i32>} : memref<8x1xf32, #tpu.memory_space<vmem>>, vector<8x1xf32>,
      %c0_24 = arith.constant 0 : index
      %c0_25 = arith.constant 0 : index
      %36 = vector.load %arg13[%c0_24, %c0_25] : memref<8x1xf32, #tpu.memory_space<vmem>>, vector<8x1xf32>
      %37 = arith.mulf %30, %30 : vector<8x256xf32>
      %cst_26 = arith.constant dense<0.000000e+00> : vector<8xf32>
      %38 = vector.multi_reduction <add>, %37, %cst_26 [1] : vector<8x256xf32> to vector<8xf32>
      %39 = vector.shape_cast %38 : vector<8xf32> to vector<8x1xf32>
      %40 = arith.addf %36, %39 : vector<8x1xf32>
      %c0_27 = arith.constant 0 : index
      %c0_28 = arith.constant 0 : index
      %41 = vector.load %arg13[%c0_27, %c0_28] : memref<8x1xf32, #tpu.memory_space<vmem>>, vector<8x1xf32>
      tpu.vector_store %arg13[%c0_27, %c0_28], %40 {strides = array<i32>} : memref<8x1xf32, #tpu.memory_space<vmem>>, vector<8x1xf32>,
      %c1_i32_29 = arith.constant 1 : i32
      %42 = arith.cmpi eq, %arg1, %c1_i32_29 : i32
      %43 = arith.extui %42 : i1 to i32
      %c0_i32_30 = arith.constant 0 : i32
      %44 = arith.cmpi ne, %43, %c0_i32_30 : i32
      scf.if %44 {
        %c0_31 = arith.constant 0 : index
        %c0_32 = arith.constant 0 : index
        %45 = vector.load %arg12[%c0_31, %c0_32] : memref<8x1xf32, #tpu.memory_space<vmem>>, vector<8x1xf32>
        %cst_33 = arith.constant 5.120000e+02 : f32
        %46 = vector.broadcast %cst_33 : f32 to vector<8x1xf32>
        %47 = arith.divf %45, %46 : vector<8x1xf32>
        %c0_34 = arith.constant 0 : index
        %c0_35 = arith.constant 0 : index
        %48 = vector.load %arg13[%c0_34, %c0_35] : memref<8x1xf32, #tpu.memory_space<vmem>>, vector<8x1xf32>
        %cst_36 = arith.constant 5.120000e+02 : f32
        %49 = vector.broadcast %cst_36 : f32 to vector<8x1xf32>
        %50 = arith.divf %48, %49 : vector<8x1xf32>
        %51 = arith.mulf %47, %47 : vector<8x1xf32>
        %52 = arith.subf %50, %51 : vector<8x1xf32>
        %cst_37 = arith.constant 0.000000e+00 : f32
        %53 = vector.broadcast %cst_37 : f32 to vector<8x1xf32>
        %54 = arith.maximumf %52, %53 : vector<8x1xf32>
        %c0_38 = arith.constant 0 : index
        %c0_39 = arith.constant 0 : index
        %55 = vector.load %arg14[%c0_38, %c0_39] : memref<8x1xf32, #tpu.memory_space<vmem>>, vector<8x1xf32>
        %56 = arith.addf %55, %47 : vector<8x1xf32>
        %c0_40 = arith.constant 0 : index
        %c0_41 = arith.constant 0 : index
        %57 = vector.load %arg15[%c0_40, %c0_41] : memref<8x1xf32, #tpu.memory_space<vmem>>, vector<8x1xf32>
        tpu.vector_store %arg15[%c0_40, %c0_41], %56 {strides = array<i32>} : memref<8x1xf32, #tpu.memory_space<vmem>>, vector<8x1xf32>,
        %cst_42 = arith.constant 9.99999974E-6 : f32
        %58 = vector.broadcast %cst_42 : f32 to vector<8x1xf32>
        %59 = arith.addf %54, %58 : vector<8x1xf32>
        %60 = math.rsqrt %59 : vector<8x1xf32>
        %c0_43 = arith.constant 0 : index
        %c0_44 = arith.constant 0 : index
        %61 = vector.load %arg16[%c0_43, %c0_44] : memref<8x1xf32, #tpu.memory_space<vmem>>, vector<8x1xf32>
        tpu.vector_store %arg16[%c0_43, %c0_44], %60 {strides = array<i32>} : memref<8x1xf32, #tpu.memory_space<vmem>>, vector<8x1xf32>,
      } else {
      }
    } else {
    }
    %c1_i32 = arith.constant 1 : i32
    %3 = arith.cmpi eq, %arg0, %c1_i32 : i32
    %4 = arith.extui %3 : i1 to i32
    %c0_i32_1 = arith.constant 0 : i32
    %5 = arith.cmpi ne, %4, %c0_i32_1 : i32
    scf.if %5 {
      %6 = arith.index_cast %arg1 : i32 to index
      %c0 = arith.constant 0 : index
      %c0_2 = arith.constant 0 : index
      %7 = vector.load %arg11[%6, %c0, %c0_2] : memref<2x8x256xf32, #tpu.memory_space<vmem>>, vector<1x8x256xf32>
      %8 = vector.shape_cast %7 : vector<1x8x256xf32> to vector<8x256xf32>
      %c0_3 = arith.constant 0 : index
      %c0_4 = arith.constant 0 : index
      %9 = vector.load %arg15[%c0_3, %c0_4] : memref<8x1xf32, #tpu.memory_space<vmem>>, vector<8x1xf32>
      %10 = vector.broadcast %9 : vector<8x1xf32> to vector<8x256xf32>
      %11 = arith.subf %8, %10 : vector<8x256xf32>
      %c0_5 = arith.constant 0 : index
      %c0_6 = arith.constant 0 : index
      %12 = vector.load %arg16[%c0_5, %c0_6] : memref<8x1xf32, #tpu.memory_space<vmem>>, vector<8x1xf32>
      %13 = vector.broadcast %12 : vector<8x1xf32> to vector<8x256xf32>
      %14 = arith.mulf %11, %13 : vector<8x256xf32>
      %cst = arith.constant 0.000000e+00 : f32
      %15 = vector.broadcast %cst : f32 to vector<8x256xf32>
      %16 = arith.maximumf %14, %15 : vector<8x256xf32>
      %c17_i32 = arith.constant 17 : i32
      %17 = tpu.dynamic_rotate %16 by %c17_i32 dim 1 : vector<8x256xf32>, i32 -> vector<8x256xf32>
      %c0_7 = arith.constant 0 : index
      %c0_8 = arith.constant 0 : index
      %18 = vector.load %arg9[%c0_7, %c0_8] : memref<9x256xf32, #tpu.memory_space<vmem>>, vector<1x256xf32>
      %19 = vector.broadcast %18 : vector<1x256xf32> to vector<8x256xf32>
      %20 = arith.mulf %17, %19 : vector<8x256xf32>
      %c16_i32 = arith.constant 16 : i32
      %21 = tpu.dynamic_rotate %16 by %c16_i32 dim 1 : vector<8x256xf32>, i32 -> vector<8x256xf32>
      %c1 = arith.constant 1 : index
      %c0_9 = arith.constant 0 : index
      %22 = vector.load %arg9[%c1, %c0_9] : memref<9x256xf32, #tpu.memory_space<vmem>>, vector<1x256xf32>
      %23 = vector.broadcast %22 : vector<1x256xf32> to vector<8x256xf32>
      %24 = arith.mulf %21, %23 : vector<8x256xf32>
      %c15_i32 = arith.constant 15 : i32
      %25 = tpu.dynamic_rotate %16 by %c15_i32 dim 1 : vector<8x256xf32>, i32 -> vector<8x256xf32>
      %c2 = arith.constant 2 : index
      %c0_10 = arith.constant 0 : index
      %26 = vector.load %arg9[%c2, %c0_10] : memref<9x256xf32, #tpu.memory_space<vmem>>, vector<1x256xf32>
      %27 = vector.broadcast %26 : vector<1x256xf32> to vector<8x256xf32>
      %28 = arith.mulf %25, %27 : vector<8x256xf32>
      %c1_i32_11 = arith.constant 1 : i32
      %29 = tpu.dynamic_rotate %16 by %c1_i32_11 dim 1 : vector<8x256xf32>, i32 -> vector<8x256xf32>
      %c3 = arith.constant 3 : index
      %c0_12 = arith.constant 0 : index
      %30 = vector.load %arg9[%c3, %c0_12] : memref<9x256xf32, #tpu.memory_space<vmem>>, vector<1x256xf32>
      %31 = vector.broadcast %30 : vector<1x256xf32> to vector<8x256xf32>
      %32 = arith.mulf %29, %31 : vector<8x256xf32>
      %c255_i32 = arith.constant 255 : i32
      %33 = tpu.dynamic_rotate %16 by %c255_i32 dim 1 : vector<8x256xf32>, i32 -> vector<8x256xf32>
      %c5 = arith.constant 5 : index
      %c0_13 = arith.constant 0 : index
      %34 = vector.load %arg9[%c5, %c0_13] : memref<9x256xf32, #tpu.memory_space<vmem>>, vector<1x256xf32>
      %35 = vector.broadcast %34 : vector<1x256xf32> to vector<8x256xf32>
      %36 = arith.mulf %33, %35 : vector<8x256xf32>
      %c241_i32 = arith.constant 241 : i32
      %37 = tpu.dynamic_rotate %16 by %c241_i32 dim 1 : vector<8x256xf32>, i32 -> vector<8x256xf32>
      %c6 = arith.constant 6 : index
      %c0_14 = arith.constant 0 : index
      %38 = vector.load %arg9[%c6, %c0_14] : memref<9x256xf32, #tpu.memory_space<vmem>>, vector<1x256xf32>
      %39 = vector.broadcast %38 : vector<1x256xf32> to vector<8x256xf32>
      %40 = arith.mulf %37, %39 : vector<8x256xf32>
      %c240_i32 = arith.constant 240 : i32
      %41 = tpu.dynamic_rotate %16 by %c240_i32 dim 1 : vector<8x256xf32>, i32 -> vector<8x256xf32>
      %c7 = arith.constant 7 : index
      %c0_15 = arith.constant 0 : index
      %42 = vector.load %arg9[%c7, %c0_15] : memref<9x256xf32, #tpu.memory_space<vmem>>, vector<1x256xf32>
      %43 = vector.broadcast %42 : vector<1x256xf32> to vector<8x256xf32>
      %44 = arith.mulf %41, %43 : vector<8x256xf32>
      %c239_i32 = arith.constant 239 : i32
      %45 = tpu.dynamic_rotate %16 by %c239_i32 dim 1 : vector<8x256xf32>, i32 -> vector<8x256xf32>
      %c8 = arith.constant 8 : index
      %c0_16 = arith.constant 0 : index
      %46 = vector.load %arg9[%c8, %c0_16] : memref<9x256xf32, #tpu.memory_space<vmem>>, vector<1x256xf32>
      %47 = vector.broadcast %46 : vector<1x256xf32> to vector<8x256xf32>
      %48 = arith.mulf %45, %47 : vector<8x256xf32>
      %49 = tpu.concatenate %20, %24, %28, %32, %16, %36, %40, %44, %48 in 0 : vector<8x256xf32>, vector<8x256xf32>, vector<8x256xf32>, vector<8x256xf32>, vector<8x256xf32>, vector<8x256xf32>, vector<8x256xf32>, vector<8x256xf32>, vector<8x256xf32> -> vector<72x256xf32>
      %c0_17 = arith.constant 0 : index
      %c0_18 = arith.constant 0 : index
      %50 = vector.load %arg7[%c0_17, %c0_18] : memref<5x72xf32, #tpu.memory_space<vmem>>, vector<5x72xf32>
      %cst_19 = arith.constant dense<0.000000e+00> : vector<5x256xf32>
      %51 = tpu.matmul %50, %49, %cst_19 {dimension_numbers = #tpu.dot_dimension_numbers<[1], [0], [0], [1], [0, 0, 1, 1], [], []>} : vector<5x72xf32>, vector<72x256xf32>, vector<5x256xf32> -> vector<5x256xf32>
      %c0_20 = arith.constant 0 : index
      %c0_21 = arith.constant 0 : index
      %52 = vector.load %arg8[%c0_20, %c0_21] : memref<5x1xf32, #tpu.memory_space<vmem>>, vector<5x1xf32>
      %53 = vector.broadcast %52 : vector<5x1xf32> to vector<5x256xf32>
      %54 = arith.addf %51, %53 : vector<5x256xf32>
      %c0_22 = arith.constant 0 : index
      %c0_23 = arith.constant 0 : index
      %c0_24 = arith.constant 0 : index
      %55 = vector.load %arg10[%c0_22, %c0_23, %c0_24] : memref<1x5x256xf32, #tpu.memory_space<vmem>>, vector<1x5x256xf32>
      %56 = vector.shape_cast %55 : vector<1x5x256xf32> to vector<5x256xf32>
      %57 = vector.shape_cast %54 : vector<5x256xf32> to vector<1x5x256xf32>
      tpu.vector_store %arg10[%c0_22, %c0_23, %c0_24], %57 {strides = array<i32>} : memref<1x5x256xf32, #tpu.memory_space<vmem>>, vector<1x5x256xf32>,
    } else {
    }
    return
  }
  func.func @transform_0(%arg0: i32, %arg1: i32) -> (i32, i32, i32) {
    %c1_i32 = arith.constant 1 : i32
    %0 = arith.subi %c1_i32, %arg0 : i32
    %1 = arith.muli %0, %arg1 : i32
    %c0_i32 = arith.constant 0 : i32
    %c0_i32_0 = arith.constant 0 : i32
    %c0_i32_1 = arith.constant 0 : i32
    return %1, %c0_i32, %c0_i32_0 : i32, i32, i32
  }
  func.func @transform_1(%arg0: i32, %arg1: i32) -> (i32, i32) {
    %c0_i32 = arith.constant 0 : i32
    %c0_i32_0 = arith.constant 0 : i32
    %c0_i32_1 = arith.constant 0 : i32
    return %c0_i32, %c0_i32_0 : i32, i32
  }
  func.func @transform_2(%arg0: i32, %arg1: i32) -> (i32, i32) {
    %c0_i32 = arith.constant 0 : i32
    %c0_i32_0 = arith.constant 0 : i32
    %c0_i32_1 = arith.constant 0 : i32
    return %c0_i32, %c0_i32_0 : i32, i32
  }
  func.func @transform_3(%arg0: i32, %arg1: i32) -> (i32, i32) {
    %c0_i32 = arith.constant 0 : i32
    %c0_i32_0 = arith.constant 0 : i32
    %c0_i32_1 = arith.constant 0 : i32
    return %c0_i32, %c0_i32_0 : i32, i32
  }
  func.func @transform_4(%arg0: i32, %arg1: i32) -> (i32, i32) {
    %c0_i32 = arith.constant 0 : i32
    %c0_i32_0 = arith.constant 0 : i32
    %c0_i32_1 = arith.constant 0 : i32
    return %c0_i32, %c0_i32_0 : i32, i32
  }
  func.func @transform_5(%arg0: i32, %arg1: i32) -> (i32, i32) {
    %c0_i32 = arith.constant 0 : i32
    %c0_i32_0 = arith.constant 0 : i32
    %c0_i32_1 = arith.constant 0 : i32
    return %c0_i32, %c0_i32_0 : i32, i32
  }
  func.func @transform_6(%arg0: i32, %arg1: i32) -> (i32, i32) {
    %c0_i32 = arith.constant 0 : i32
    %c0_i32_0 = arith.constant 0 : i32
    %c0_i32_1 = arith.constant 0 : i32
    return %c0_i32, %c0_i32_0 : i32, i32
  }
  func.func @transform_7(%arg0: i32, %arg1: i32) -> (i32, i32) {
    %c0_i32 = arith.constant 0 : i32
    %c0_i32_0 = arith.constant 0 : i32
    %c0_i32_1 = arith.constant 0 : i32
    return %c0_i32, %c0_i32_0 : i32, i32
  }
  func.func @transform_8(%arg0: i32, %arg1: i32) -> (i32, i32, i32) {
    %0 = arith.muli %arg0, %arg1 : i32
    %c0_i32 = arith.constant 0 : i32
    %c0_i32_0 = arith.constant 0 : i32
    %c0_i32_1 = arith.constant 0 : i32
    return %0, %c0_i32, %c0_i32_0 : i32, i32, i32
  }
}

module attributes {stable_mosaic.version = 11 : i64} {
  func.func @bn1_stats_kernel(%arg0: i32, %arg1: memref<1x4x256xf32, #tpu.memory_space<vmem>>, %arg2: memref<4x1xf32, #tpu.memory_space<vmem>>, %arg3: memref<4x1xf32, #tpu.memory_space<vmem>>, %arg4: memref<4x1xf32, #tpu.memory_space<vmem>>, %arg5: memref<4x1xf32, #tpu.memory_space<vmem>>, %arg6: memref<4x1xf32, #tpu.memory_space<vmem>>) attributes {dimension_semantics = [#tpu.dimension_semantics<arbitrary>], iteration_bounds = array<i64: 2>, scalar_prefetch = 0 : i64, scratch_operands = 3 : i64, tpu.core_type = #tpu.core_type<tc>, window_params = [{transform_indices = @transform_0, window_bounds = array<i64: 1, 4, 256>}, {pipeline_mode = #tpu.pipeline_mode<synchronous>, transform_indices = @transform_1, window_bounds = array<i64: 4, 1>}, {pipeline_mode = #tpu.pipeline_mode<synchronous>, transform_indices = @transform_2, window_bounds = array<i64: 4, 1>}]} {
    %c0 = arith.constant 0 : index
    %c0_0 = arith.constant 0 : index
    %c0_1 = arith.constant 0 : index
    %0 = vector.load %arg1[%c0, %c0_0, %c0_1] : memref<1x4x256xf32, #tpu.memory_space<vmem>>, vector<1x4x256xf32>
    %1 = vector.shape_cast %0 : vector<1x4x256xf32> to vector<4x256xf32>
    %c0_i32 = arith.constant 0 : i32
    %2 = arith.cmpi eq, %arg0, %c0_i32 : i32
    %3 = arith.extui %2 : i1 to i32
    %c0_i32_2 = arith.constant 0 : i32
    %4 = arith.cmpi ne, %3, %c0_i32_2 : i32
    scf.if %4 {
      %22 = vector.extract_strided_slice %1 {offsets = [0, 0], sizes = [4, 1], strides = [1, 1]} : vector<4x256xf32> to vector<4x1xf32>
      %c0_15 = arith.constant 0 : index
      %c0_16 = arith.constant 0 : index
      %23 = vector.load %arg6[%c0_15, %c0_16] : memref<4x1xf32, #tpu.memory_space<vmem>>, vector<4x1xf32>
      tpu.vector_store %arg6[%c0_15, %c0_16], %22 {strides = array<i32>} : memref<4x1xf32, #tpu.memory_space<vmem>>, vector<4x1xf32>,
      %cst_17 = arith.constant 0.000000e+00 : f32
      %24 = vector.broadcast %cst_17 : f32 to vector<4x1xf32>
      %c0_18 = arith.constant 0 : index
      %c0_19 = arith.constant 0 : index
      %25 = vector.load %arg4[%c0_18, %c0_19] : memref<4x1xf32, #tpu.memory_space<vmem>>, vector<4x1xf32>
      tpu.vector_store %arg4[%c0_18, %c0_19], %24 {strides = array<i32>} : memref<4x1xf32, #tpu.memory_space<vmem>>, vector<4x1xf32>,
      %cst_20 = arith.constant 0.000000e+00 : f32
      %26 = vector.broadcast %cst_20 : f32 to vector<4x1xf32>
      %c0_21 = arith.constant 0 : index
      %c0_22 = arith.constant 0 : index
      %27 = vector.load %arg5[%c0_21, %c0_22] : memref<4x1xf32, #tpu.memory_space<vmem>>, vector<4x1xf32>
      tpu.vector_store %arg5[%c0_21, %c0_22], %26 {strides = array<i32>} : memref<4x1xf32, #tpu.memory_space<vmem>>, vector<4x1xf32>,
    } else {
    }
    %c0_3 = arith.constant 0 : index
    %c0_4 = arith.constant 0 : index
    %5 = vector.load %arg6[%c0_3, %c0_4] : memref<4x1xf32, #tpu.memory_space<vmem>>, vector<4x1xf32>
    %6 = vector.broadcast %5 : vector<4x1xf32> to vector<4x256xf32>
    %7 = arith.subf %1, %6 : vector<4x256xf32>
    %c0_5 = arith.constant 0 : index
    %c0_6 = arith.constant 0 : index
    %8 = vector.load %arg4[%c0_5, %c0_6] : memref<4x1xf32, #tpu.memory_space<vmem>>, vector<4x1xf32>
    %cst = arith.constant dense<0.000000e+00> : vector<4xf32>
    %9 = vector.multi_reduction <add>, %7, %cst [1] : vector<4x256xf32> to vector<4xf32>
    %10 = vector.shape_cast %9 : vector<4xf32> to vector<4x1xf32>
    %11 = arith.addf %8, %10 : vector<4x1xf32>
    %c0_7 = arith.constant 0 : index
    %c0_8 = arith.constant 0 : index
    %12 = vector.load %arg4[%c0_7, %c0_8] : memref<4x1xf32, #tpu.memory_space<vmem>>, vector<4x1xf32>
    tpu.vector_store %arg4[%c0_7, %c0_8], %11 {strides = array<i32>} : memref<4x1xf32, #tpu.memory_space<vmem>>, vector<4x1xf32>,
    %c0_9 = arith.constant 0 : index
    %c0_10 = arith.constant 0 : index
    %13 = vector.load %arg5[%c0_9, %c0_10] : memref<4x1xf32, #tpu.memory_space<vmem>>, vector<4x1xf32>
    %14 = arith.mulf %7, %7 : vector<4x256xf32>
    %cst_11 = arith.constant dense<0.000000e+00> : vector<4xf32>
    %15 = vector.multi_reduction <add>, %14, %cst_11 [1] : vector<4x256xf32> to vector<4xf32>
    %16 = vector.shape_cast %15 : vector<4xf32> to vector<4x1xf32>
    %17 = arith.addf %13, %16 : vector<4x1xf32>
    %c0_12 = arith.constant 0 : index
    %c0_13 = arith.constant 0 : index
    %18 = vector.load %arg5[%c0_12, %c0_13] : memref<4x1xf32, #tpu.memory_space<vmem>>, vector<4x1xf32>
    tpu.vector_store %arg5[%c0_12, %c0_13], %17 {strides = array<i32>} : memref<4x1xf32, #tpu.memory_space<vmem>>, vector<4x1xf32>,
    %c1_i32 = arith.constant 1 : i32
    %19 = arith.cmpi eq, %arg0, %c1_i32 : i32
    %20 = arith.extui %19 : i1 to i32
    %c0_i32_14 = arith.constant 0 : i32
    %21 = arith.cmpi ne, %20, %c0_i32_14 : i32
    scf.if %21 {
      %c0_15 = arith.constant 0 : index
      %c0_16 = arith.constant 0 : index
      %22 = vector.load %arg4[%c0_15, %c0_16] : memref<4x1xf32, #tpu.memory_space<vmem>>, vector<4x1xf32>
      %cst_17 = arith.constant 5.120000e+02 : f32
      %23 = vector.broadcast %cst_17 : f32 to vector<4x1xf32>
      %24 = arith.divf %22, %23 : vector<4x1xf32>
      %c0_18 = arith.constant 0 : index
      %c0_19 = arith.constant 0 : index
      %25 = vector.load %arg5[%c0_18, %c0_19] : memref<4x1xf32, #tpu.memory_space<vmem>>, vector<4x1xf32>
      %cst_20 = arith.constant 5.120000e+02 : f32
      %26 = vector.broadcast %cst_20 : f32 to vector<4x1xf32>
      %27 = arith.divf %25, %26 : vector<4x1xf32>
      %28 = arith.mulf %24, %24 : vector<4x1xf32>
      %29 = arith.subf %27, %28 : vector<4x1xf32>
      %cst_21 = arith.constant 0.000000e+00 : f32
      %30 = vector.broadcast %cst_21 : f32 to vector<4x1xf32>
      %31 = arith.maximumf %29, %30 : vector<4x1xf32>
      %c0_22 = arith.constant 0 : index
      %c0_23 = arith.constant 0 : index
      %32 = vector.load %arg6[%c0_22, %c0_23] : memref<4x1xf32, #tpu.memory_space<vmem>>, vector<4x1xf32>
      %33 = arith.addf %32, %24 : vector<4x1xf32>
      %c0_24 = arith.constant 0 : index
      %c0_25 = arith.constant 0 : index
      %34 = vector.load %arg2[%c0_24, %c0_25] : memref<4x1xf32, #tpu.memory_space<vmem>>, vector<4x1xf32>
      tpu.vector_store %arg2[%c0_24, %c0_25], %33 {strides = array<i32>} : memref<4x1xf32, #tpu.memory_space<vmem>>, vector<4x1xf32>,
      %cst_26 = arith.constant 9.99999974E-6 : f32
      %35 = vector.broadcast %cst_26 : f32 to vector<4x1xf32>
      %36 = arith.addf %31, %35 : vector<4x1xf32>
      %37 = math.rsqrt %36 : vector<4x1xf32>
      %c0_27 = arith.constant 0 : index
      %c0_28 = arith.constant 0 : index
      %38 = vector.load %arg3[%c0_27, %c0_28] : memref<4x1xf32, #tpu.memory_space<vmem>>, vector<4x1xf32>
      tpu.vector_store %arg3[%c0_27, %c0_28], %37 {strides = array<i32>} : memref<4x1xf32, #tpu.memory_space<vmem>>, vector<4x1xf32>,
    } else {
    }
    return
  }
  func.func @transform_0(%arg0: i32) -> (i32, i32, i32) {
    %c0_i32 = arith.constant 0 : i32
    %c0_i32_0 = arith.constant 0 : i32
    %c0_i32_1 = arith.constant 0 : i32
    return %arg0, %c0_i32, %c0_i32_0 : i32, i32, i32
  }
  func.func @transform_1(%arg0: i32) -> (i32, i32) {
    %c0_i32 = arith.constant 0 : i32
    %c0_i32_0 = arith.constant 0 : i32
    %c0_i32_1 = arith.constant 0 : i32
    return %c0_i32, %c0_i32_0 : i32, i32
  }
  func.func @transform_2(%arg0: i32) -> (i32, i32) {
    %c0_i32 = arith.constant 0 : i32
    %c0_i32_0 = arith.constant 0 : i32
    %c0_i32_1 = arith.constant 0 : i32
    return %c0_i32, %c0_i32_0 : i32, i32
  }
}

</mosaic_0001>

<llo_original>
// kernel: bottleneck_forward.2
$region0: #{bottleneck_forward.2}
  #allocation0 [shape = 'u32[]', space=smem, size = 0x4, offset = 0x4, fixed_abs, tag = 'smem constant byte address 0x4 - core index']
  #allocation1 [shape = 'u32[72,128]{1,0:T(1,128)}', space=vmem, size = 0x9000, scoped, tag = 'internal scratch']
  #allocation2 [shape = 'f32[4,1]{1,0:T(4,128)}', space=vmem, size = 0x800, scoped, tag = 'scratch operand']
  #allocation3 [shape = 'f32[4,1]{1,0:T(4,128)}', space=vmem, size = 0x800, scoped, tag = 'scratch operand']
  #allocation4 [shape = 'f32[4,1]{1,0:T(4,128)}', space=vmem, size = 0x800, scoped, tag = 'scratch operand']
  %s0 = inlined_call_operand.vmem [shape: f32[2,4,256], index: 0, kind: input, shape index: {}]
  %s1 = inlined_call_operand.vmem [shape: f32[4,1], index: 1, kind: output, shape index: {0}]
  %s2 = inlined_call_operand.vmem [shape: f32[4,1], index: 2, kind: output, shape index: {1}]
  %3 = xla_tuple %s1, %s2
  %s4 = sld [smem:[#allocation0]]
  $region53: #{bottleneck_forward.2} parent=0
    _
  %s6 = ssub.s32 1, %s4
  %s7 = scalar_select 0, %s6, %s4
  loop: start=0, step=1, limit=4
  $region2: #{bottleneck_forward.2} parent=0 // loop_pre_header
    _
  $region3: #{bottleneck_forward.2} parent=0 // loop_header
    %s9 = sphi 0, %s13
    %p10 = scmp.ge.s32.totalorder %s9, 4
    %s19 = sphi 0, %s21
    %s22 = sphi 0, %s19
    %s23 = sphi 0, %s22
    %s39 = sphi 0, %s23
    %s43 = sphi 0, %s43
    %s45 = sphi 0, %s43
    %s46 = sphi 0, %s45
    %s60 = sphi 0, %s46
    %s64 = sphi 0, %s64
    %s66 = sphi 0, %s64
    %s67 = sphi 0, %s66
    %s81 = sphi 0, %s67
  $region4: #{bottleneck_forward.2} parent=0 // loop_header_branch
    %12 = sbr.rel (%p10) target = $region8
  $region5: #{bottleneck_forward.2} parent=0 // loop_body
    %s14 = ssub.s32 %s9, 1
    %s15 = ssub.s32 %s9, 2
    %s16 = sadd.s32 %s9, 1
    %s17 = ssub.s32 %s9, %s16
    %p18 = scmp.eq.s32.totalorder %s17, 0
    %s20 = sadd.s32 %s19, 1
    %s21 = scalar_select %p18, %s19, %s20
    %p24 = pneg %p18
    %p25 = scmp.eq.s32.totalorder %s9, 1
    %p26 = por %p24, %p25
    %p27 = scmp.ne.s32.totalorder %s19, %s22
    %p28 = scmp.eq.s32.totalorder %s9, 0
    %p29 = por %p27, %p28
    %p30 = scmp.ne.s32.totalorder %s19, %s22
    %p31 = scmp.eq.s32.totalorder %s14, 1
    %p32 = por %p30, %p31
    %p33 = scmp.ne.s32.totalorder %s22, %s23
    %p34 = scmp.eq.s32.totalorder %s14, 0
    %p35 = por %p33, %p34
    %p36 = scmp.ne.s32.totalorder %s22, %s23
    %p37 = scmp.eq.s32.totalorder %s15, 1
    %p38 = por %p36, %p37
    %p40 = scmp.ne.s32.totalorder %s23, %s39
    %p41 = scmp.eq.s32.totalorder %s15, 0
    %p42 = por %p40, %p41
    %s44 = sadd.s32 %s43, 1
    %p47 = scmp.eq.s32.totalorder %s9, 1
    %p48 = scmp.ne.s32.totalorder %s43, %s45
    %p49 = scmp.eq.s32.totalorder %s9, 0
    %p50 = por %p48, %p49
    %p51 = scmp.ne.s32.totalorder %s43, %s45
    %p52 = scmp.eq.s32.totalorder %s14, 1
    %p53 = por %p51, %p52
    %p54 = scmp.ne.s32.totalorder %s45, %s46
    %p55 = scmp.eq.s32.totalorder %s14, 0
    %p56 = por %p54, %p55
    %p57 = scmp.ne.s32.totalorder %s45, %s46
    %p58 = scmp.eq.s32.totalorder %s15, 1
    %p59 = por %p57, %p58
    %p61 = scmp.ne.s32.totalorder %s46, %s60
    %p62 = scmp.eq.s32.totalorder %s15, 0
    %p63 = por %p61, %p62
    %s65 = sadd.s32 %s64, 1
    %p68 = scmp.eq.s32.totalorder %s9, 1
    %p69 = scmp.ne.s32.totalorder %s64, %s66
    %p70 = scmp.eq.s32.totalorder %s9, 0
    %p71 = por %p69, %p70
    %p72 = scmp.ne.s32.totalorder %s64, %s66
    %p73 = scmp.eq.s32.totalorder %s14, 1
    %p74 = por %p72, %p73
    %p75 = scmp.ne.s32.totalorder %s66, %s67
    %p76 = scmp.eq.s32.totalorder %s14, 0
    %p77 = por %p75, %p76
    %p78 = scmp.ne.s32.totalorder %s66, %s67
    %p79 = scmp.eq.s32.totalorder %s15, 1
    %p80 = por %p78, %p79
    %p82 = scmp.ne.s32.totalorder %s67, %s81
    %p83 = scmp.eq.s32.totalorder %s15, 0
    %p84 = por %p82, %p83
    %p85 = scmp.le.s32.totalorder 1, %s9
    %p86 = scmp.lt.s32.totalorder %s9, 3
    %p87 = pnand %p85, %p86
    %p88 = pneg %p87
    // Predicated region
    $region9: #{bottleneck_forward.2} parent=5 // pred_check
      _
    $region10: #{bottleneck_forward.2} parent=5 // pred_check_branch
      %90 = sbr.rel (%p87) target = $region12
    $region11: #{bottleneck_forward.2} parent=5 // pred_region
      %s91 = ssub.s32 %s9, 1
    $region12: #{bottleneck_forward.2} parent=5 // pred_fallthru
      _
    %p92 = scmp.lt.s32.totalorder %s9, 2
    // Predicated region
    $region13: #{bottleneck_forward.2} parent=5 // pred_check
      %p93 = pneg %p92
    $region14: #{bottleneck_forward.2} parent=5 // pred_check_branch
      %95 = sbr.rel (%p93) target = $region16
    $region15: #{bottleneck_forward.2} parent=5 // pred_region
      // Predicated region
      $region17: #{bottleneck_forward.2} parent=15 // pred_check
        %p96 = pneg %p29
      $region18: #{bottleneck_forward.2} parent=15 // pred_check_branch
        %98 = sbr.rel (%p96) target = $region20
      $region19: #{bottleneck_forward.2} parent=15 // pred_region
        %p99 = scmp.lt.s32.totalorder %s9, 1
        %s100 = scalar_select %p99, %s9, 1
        %s101 = smul.addr %s100, 2
        %s102 = smul.addr %s101, 4
        %s103 = scalar_lea.vmem %s0, %s102
      $region20: #{bottleneck_forward.2} parent=15 // pred_fallthru
        _
    $region16: #{bottleneck_forward.2} parent=5 // pred_fallthru
      _
    %p104 = scmp.le.s32.totalorder 1, %s9
    %p105 = scmp.lt.s32.totalorder %s9, 3
    %p106 = pnand %p104, %p105
    %p107 = pneg %p106
    // Predicated region
    $region21: #{bottleneck_forward.2} parent=5 // pred_check
      _
    $region22: #{bottleneck_forward.2} parent=5 // pred_check_branch
      %109 = sbr.rel (%p106) target = $region24
    $region23: #{bottleneck_forward.2} parent=5 // pred_region
      %s110 = ssub.s32 %s9, 1
      %p111 = scmp.lt.s32.totalorder %s14, 1
      %s112 = scalar_select %p111, %s14, 1
      %s113 = smul.addr %s112, 2
      %s114 = smul.addr %s113, 4
      %s115 = scalar_lea.vmem %s0, %s114
      %p116 = pneg %p35
      %p117 = pneg %p32
      %p118 = pneg %p56
      %p119 = pneg %p53
      %p120 = pneg %p77
      %p121 = pneg %p74
      %p122 = scmp.lt.s32.totalorder %s14, 1
      %s123 = scalar_select %p122, %s14, 1
      %s124 = smul.addr %s123, 2
      %s125 = smul.addr %s124, 4
      %s126 = scalar_lea.vmem %s0, %s125
      %v127 = vld [vmem:[%s126] sm:$0xff]
      %p128 = scmp.eq.s32.totalorder %s14, 0
      // Predicated region
      $region25: #{bottleneck_forward.2} parent=23 // pred_check
        %p129 = pneg %p128
      $region26: #{bottleneck_forward.2} parent=23 // pred_check_branch
        %131 = sbr.rel (%p129) target = $region28
      $region27: #{bottleneck_forward.2} parent=23 // pred_region
        %vm132 = vcmask 3072
        %133 = vst.msk [vmem:[#allocation4] sm:$0xf] %vm132, %v127
        %134 = vst.msk [vmem:[#allocation2] sm:$0xf] %vm132, 0.0
        %135 = vst.msk [vmem:[#allocation3] sm:$0xf] %vm132, 0.0
      $region28: #{bottleneck_forward.2} parent=23 // pred_fallthru
        _
      %v136 = vld [vmem:[#allocation4] sm:$0xf]
      %138 = vset.pattern.permute.xlu0 0
      %139 = vperm.xlu0 %138, %v136
      %v140 = vpop.permute.xlu0 %139
      %v142 = vunpack.c.l.s4 839922192
      %v143 = vunpack.c.0.s8 %v142
      %v144 = vperm.slane %v140, %v143
      %v146 = vsub.f32 %v127, %v144
      %v147 = vld [vmem:[#allocation2] sm:$0xf]
      %149 = vst [vmem:[#allocation1] ss:$2 sm:$0xff] %v146
      %v150 = vld.sshfl [vmem:[#allocation1] sm:$0xff pattern:$0x75316420]
      %v151 = vld.sshfl [vmem:[#allocation1 + $0x8] sm:$0xff pattern:$0x75316420]
      %vm154 = vcmask 1043456
      %v155 = vsel %vm154, %v150, 0.0
      %v156 = vsel %vm154, %v151, 0.0
      %v157 = vadd.f32 %v155, %v156
      %158 = vadd.xlane.f32.xlu0 %v157
      %v159 = vpop.xlane.xlu0 %158
      %v160 = vadd.f32 %v147, %v159
      %vm161 = vcmask 3072
      %162 = vst.msk [vmem:[#allocation2] sm:$0xf] %vm161, %v160
      %v163 = vld [vmem:[#allocation3] sm:$0xf]
      %v164 = vmul.f32 %v146, %v146
      %166 = vst [vmem:[#allocation1] ss:$2 sm:$0xff] %v164
      %v167 = vld.sshfl [vmem:[#allocation1] sm:$0xff pattern:$0x75316420]
      %v168 = vld.sshfl [vmem:[#allocation1 + $0x8] sm:$0xff pattern:$0x75316420]
      %v171 = vsel %vm154, %v167, 0.0
      %v172 = vsel %vm154, %v168, 0.0
      %v173 = vadd.f32 %v171, %v172
      %174 = vadd.xlane.f32.xlu0 %v173
      %v175 = vpop.xlane.xlu0 %174
      %v176 = vadd.f32 %v163, %v175
      %177 = vst.msk [vmem:[#allocation3] sm:$0xf] %vm161, %v176
      %p178 = scmp.eq.s32.totalorder %s14, 1
      // Predicated region
      $region29: #{bottleneck_forward.2} parent=23 // pred_check
        %p179 = pneg %p178
      $region30: #{bottleneck_forward.2} parent=23 // pred_check_branch
        %181 = sbr.rel (%p179) target = $region32
      $region31: #{bottleneck_forward.2} parent=23 // pred_region
        %v182 = vld [vmem:[#allocation2] sm:$0xf]
        %v183 = vrcp.pop 512.0
        %v184 = vmul.f32 512.0, %v183
        %v185 = vsub.f32 1.0, %v184
        %v186 = vmul.f32 %v183, %v185
        %v187 = vadd.f32 %v183, %v186
        %vm188 = vweird.f32 %v183
        %v189 = vsel %vm188, %v183, %v187
        %v190 = vmul.f32 %v182, %v189
        %v191 = vld [vmem:[#allocation3] sm:$0xf]
        %v192 = vmul.f32 %v191, %v189
        %v193 = vmul.f32 %v190, %v190
        %v194 = vsub.f32 %v192, %v193
        %v195 = vmax.f32 %v194, 0.0
        %v196 = vld [vmem:[#allocation4] sm:$0xf]
        %v197 = vadd.f32 %v196, %v190
        %198 = vst.msk [vmem:[%s1] sm:$0xf] %vm161, %v197
        %v199 = vadd.f32 %v195, 1e-05
        %v200 = vrsqrt.pop %v199
        %v201 = vmul.f32 %v200, %v199
        %v202 = vmul.f32 %v201, %v200
        %v203 = vmul.f32 0.5, %v202
        %v204 = vsub.f32 1.5, %v203
        %v205 = vmul.f32 %v200, %v204
        %vm206 = vweird.f32 %v199
        %vm207 = vweird.f32 %v200
        %vm208 = vmor %vm206, %vm207
        %v209 = vsel %vm208, %v200, %v205
        %210 = vst.msk [vmem:[%s2] sm:$0xf] %vm161, %v209
      $region32: #{bottleneck_forward.2} parent=23 // pred_fallthru
        _
      // Predicated region
      $region33: #{bottleneck_forward.2} parent=23 // pred_check
        %p211 = pneg %p53
      $region34: #{bottleneck_forward.2} parent=23 // pred_check_branch
        %213 = sbr.rel (%p211) target = $region36
      $region35: #{bottleneck_forward.2} parent=23 // pred_region
        _
      $region36: #{bottleneck_forward.2} parent=23 // pred_fallthru
        _
      // Predicated region
      $region37: #{bottleneck_forward.2} parent=23 // pred_check
        %p214 = pneg %p74
      $region38: #{bottleneck_forward.2} parent=23 // pred_check_branch
        %216 = sbr.rel (%p214) target = $region40
      $region39: #{bottleneck_forward.2} parent=23 // pred_region
        _
      $region40: #{bottleneck_forward.2} parent=23 // pred_fallthru
        _
      // Predicated region
      $region41: #{bottleneck_forward.2} parent=23 // pred_check
        %p217 = pneg %p53
      $region42: #{bottleneck_forward.2} parent=23 // pred_check_branch
        %219 = sbr.rel (%p217) target = $region44
      $region43: #{bottleneck_forward.2} parent=23 // pred_region
        _
      $region44: #{bottleneck_forward.2} parent=23 // pred_fallthru
        _
      // Predicated region
      $region45: #{bottleneck_forward.2} parent=23 // pred_check
        %p220 = pneg %p74
      $region46: #{bottleneck_forward.2} parent=23 // pred_check_branch
        %222 = sbr.rel (%p220) target = $region48
      $region47: #{bottleneck_forward.2} parent=23 // pred_region
        _
      $region48: #{bottleneck_forward.2} parent=23 // pred_fallthru
        _
    $region24: #{bottleneck_forward.2} parent=5 // pred_fallthru
      _
    %p223 = scmp.le.s32.totalorder 2, %s9
    // Predicated region
    $region49: #{bottleneck_forward.2} parent=5 // pred_check
      %p224 = pneg %p223
    $region50: #{bottleneck_forward.2} parent=5 // pred_check_branch
      %226 = sbr.rel (%p224) target = $region52
    $region51: #{bottleneck_forward.2} parent=5 // pred_region
      %s227 = ssub.s32 %s9, 2
    $region52: #{bottleneck_forward.2} parent=5 // pred_fallthru
      _
  $region6: #{bottleneck_forward.2} parent=0 // loop_footer
    %s13 = sadd.s32 1, %s9
  $region7: #{bottleneck_forward.2} parent=0 // loop_footer_branch
    %8 = sbr.rel target = $region3
  $region8: #{bottleneck_forward.2} parent=0 // loop_exit
    _

// kernel: bottleneck_forward.3
$region0: #{bottleneck_forward.3}
  #allocation0 [shape = 'u32[]', space=smem, size = 0x4, offset = 0x4, fixed_abs, tag = 'smem constant byte address 0x4 - core index']
  #allocation1 [shape = 'u32[72,128]{1,0:T(1,128)}', space=vmem, size = 0x9000, scoped, tag = 'internal scratch']
  #allocation2 [shape = 'f32[2,8,256]{2,1,0:T(8,128)}', space=vmem, size = 0x4000, scoped, tag = 'scratch operand']
  #allocation3 [shape = 'f32[8,1]{1,0:T(8,128)}', space=vmem, size = 0x1000, scoped, tag = 'scratch operand']
  #allocation4 [shape = 'f32[8,1]{1,0:T(8,128)}', space=vmem, size = 0x1000, scoped, tag = 'scratch operand']
  #allocation5 [shape = 'f32[8,1]{1,0:T(8,128)}', space=vmem, size = 0x1000, scoped, tag = 'scratch operand']
  #allocation6 [shape = 'f32[8,1]{1,0:T(8,128)}', space=vmem, size = 0x1000, scoped, tag = 'scratch operand']
  #allocation7 [shape = 'f32[8,1]{1,0:T(8,128)}', space=vmem, size = 0x1000, scoped, tag = 'scratch operand']
  %s0 = inlined_call_operand.vmem [shape: f32[2,4,256], index: 0, kind: input, shape index: {}]
  %s1 = inlined_call_operand.vmem [shape: f32[4,1], index: 1, kind: input, shape index: {}]
  %s2 = inlined_call_operand.vmem [shape: f32[4,1], index: 2, kind: input, shape index: {}]
  %s3 = inlined_call_operand.vmem [shape: f32[8,4], index: 3, kind: input, shape index: {}]
  %s4 = inlined_call_operand.vmem [shape: f32[8,1], index: 4, kind: input, shape index: {}]
  %s5 = inlined_call_operand.vmem [shape: f32[5,72], index: 5, kind: input, shape index: {}]
  %s6 = inlined_call_operand.vmem [shape: f32[5,1], index: 6, kind: input, shape index: {}]
  %s7 = inlined_call_operand.vmem [shape: f32[9,256], index: 7, kind: input, shape index: {}]
  %s8 = inlined_call_operand.vmem [shape: f32[2,5,256], index: 8, kind: output, shape index: {}]
  %s9 = sld [smem:[#allocation0]]
  $region81: #{bottleneck_forward.3} parent=0
    _
  %s11 = ssub.s32 1, %s9
  %s12 = scalar_select 0, %s11, %s9
  loop: start=0, step=1, limit=6
  $region2: #{bottleneck_forward.3} parent=0 // loop_pre_header
    _
  $region3: #{bottleneck_forward.3} parent=0 // loop_header
    %s14 = sphi 0, %s18
    %p15 = scmp.ge.s32.totalorder %s14, 6
    %s21 = sphi 0, %s33
    %s22 = sphi 0, %s29
    %s23 = sphi 0, %s21
    %s24 = sphi 0, %s22
    %s25 = sphi 0, %s23
    %s26 = sphi 0, %s24
    %s40 = sphi 0, %s42
    %s43 = sphi 0, %s40
    %s44 = sphi 0, %s43
    %s60 = sphi 0, %s44
    %s64 = sphi 0, %s64
    %s66 = sphi 0, %s64
    %s67 = sphi 0, %s66
    %s81 = sphi 0, %s67
    %s85 = sphi 0, %s85
    %s87 = sphi 0, %s85
    %s88 = sphi 0, %s87
    %s102 = sphi 0, %s88
    %s106 = sphi 0, %s106
    %s108 = sphi 0, %s106
    %s109 = sphi 0, %s108
    %s123 = sphi 0, %s109
    %s127 = sphi 0, %s127
    %s129 = sphi 0, %s127
    %s130 = sphi 0, %s129
    %s144 = sphi 0, %s130
    %s148 = sphi 0, %s148
    %s150 = sphi 0, %s148
    %s151 = sphi 0, %s150
    %s165 = sphi 0, %s151
    %s169 = sphi 0, %s169
    %s171 = sphi 0, %s169
    %s172 = sphi 0, %s171
    %s186 = sphi 0, %s172
    %s190 = sphi 0, %s190
    %s192 = sphi 0, %s190
    %s193 = sphi 0, %s192
    %s207 = sphi 0, %s193
    %s215 = sphi 0, %s217
    %s218 = sphi 0, %s215
    %s219 = sphi 0, %s218
    %s235 = sphi 0, %s219
  $region4: #{bottleneck_forward.3} parent=0 // loop_header_branch
    %17 = sbr.rel (%p15) target = $region8
  $region5: #{bottleneck_forward.3} parent=0 // loop_body
    %s19 = ssub.s32 %s14, 1
    %s20 = ssub.s32 %s14, 2
    %s27 = sadd.s32 1, %s22
    %p28 = scmp.ge.s32.totalorder %s27, 2
    %s29 = scalar_select %p28, 0, %s27
    %s30 = sadd.s32 1, %s21
    %s31 = scalar_select %p28, %s30, %s21
    %p32 = scmp.ge.s32.totalorder %s31, 2
    %s33 = scalar_select %p32, 0, %s31
    %s34 = ssub.s32 1, %s21
    %s35 = smul.u32 %s34, %s22
    %s36 = ssub.s32 1, %s33
    %s37 = smul.u32 %s36, %s29
    %s38 = ssub.s32 %s35, %s37
    %p39 = scmp.eq.s32.totalorder %s38, 0
    %s41 = sadd.s32 %s40, 1
    %s42 = scalar_select %p39, %s40, %s41
    %p45 = pneg %p39
    %p46 = scmp.eq.s32.totalorder %s14, 3
    %p47 = por %p45, %p46
    %p48 = scmp.ne.s32.totalorder %s40, %s43
    %p49 = scmp.eq.s32.totalorder %s14, 0
    %p50 = por %p48, %p49
    %p51 = scmp.ne.s32.totalorder %s40, %s43
    %p52 = scmp.eq.s32.totalorder %s19, 3
    %p53 = por %p51, %p52
    %p54 = scmp.ne.s32.totalorder %s43, %s44
    %p55 = scmp.eq.s32.totalorder %s19, 0
    %p56 = por %p54, %p55
    %p57 = scmp.ne.s32.totalorder %s43, %s44
    %p58 = scmp.eq.s32.totalorder %s20, 3
    %p59 = por %p57, %p58
    %p61 = scmp.ne.s32.totalorder %s44, %s60
    %p62 = scmp.eq.s32.totalorder %s20, 0
    %p63 = por %p61, %p62
    %s65 = sadd.s32 %s64, 1
    %p68 = scmp.eq.s32.totalorder %s14, 3
    %p69 = scmp.ne.s32.totalorder %s64, %s66
    %p70 = scmp.eq.s32.totalorder %s14, 0
    %p71 = por %p69, %p70
    %p72 = scmp.ne.s32.totalorder %s64, %s66
    %p73 = scmp.eq.s32.totalorder %s19, 3
    %p74 = por %p72, %p73
    %p75 = scmp.ne.s32.totalorder %s66, %s67
    %p76 = scmp.eq.s32.totalorder %s19, 0
    %p77 = por %p75, %p76
    %p78 = scmp.ne.s32.totalorder %s66, %s67
    %p79 = scmp.eq.s32.totalorder %s20, 3
    %p80 = por %p78, %p79
    %p82 = scmp.ne.s32.totalorder %s67, %s81
    %p83 = scmp.eq.s32.totalorder %s20, 0
    %p84 = por %p82, %p83
    %s86 = sadd.s32 %s85, 1
    %p89 = scmp.eq.s32.totalorder %s14, 3
    %p90 = scmp.ne.s32.totalorder %s85, %s87
    %p91 = scmp.eq.s32.totalorder %s14, 0
    %p92 = por %p90, %p91
    %p93 = scmp.ne.s32.totalorder %s85, %s87
    %p94 = scmp.eq.s32.totalorder %s19, 3
    %p95 = por %p93, %p94
    %p96 = scmp.ne.s32.totalorder %s87, %s88
    %p97 = scmp.eq.s32.totalorder %s19, 0
    %p98 = por %p96, %p97
    %p99 = scmp.ne.s32.totalorder %s87, %s88
    %p100 = scmp.eq.s32.totalorder %s20, 3
    %p101 = por %p99, %p100
    %p103 = scmp.ne.s32.totalorder %s88, %s102
    %p104 = scmp.eq.s32.totalorder %s20, 0
    %p105 = por %p103, %p104
    %s107 = sadd.s32 %s106, 1
    %p110 = scmp.eq.s32.totalorder %s14, 3
    %p111 = scmp.ne.s32.totalorder %s106, %s108
    %p112 = scmp.eq.s32.totalorder %s14, 0
    %p113 = por %p111, %p112
    %p114 = scmp.ne.s32.totalorder %s106, %s108
    %p115 = scmp.eq.s32.totalorder %s19, 3
    %p116 = por %p114, %p115
    %p117 = scmp.ne.s32.totalorder %s108, %s109
    %p118 = scmp.eq.s32.totalorder %s19, 0
    %p119 = por %p117, %p118
    %p120 = scmp.ne.s32.totalorder %s108, %s109
    %p121 = scmp.eq.s32.totalorder %s20, 3
    %p122 = por %p120, %p121
    %p124 = scmp.ne.s32.totalorder %s109, %s123
    %p125 = scmp.eq.s32.totalorder %s20, 0
    %p126 = por %p124, %p125
    %s128 = sadd.s32 %s127, 1
    %p131 = scmp.eq.s32.totalorder %s14, 3
    %p132 = scmp.ne.s32.totalorder %s127, %s129
    %p133 = scmp.eq.s32.totalorder %s14, 0
    %p134 = por %p132, %p133
    %p135 = scmp.ne.s32.totalorder %s127, %s129
    %p136 = scmp.eq.s32.totalorder %s19, 3
    %p137 = por %p135, %p136
    %p138 = scmp.ne.s32.totalorder %s129, %s130
    %p139 = scmp.eq.s32.totalorder %s19, 0
    %p140 = por %p138, %p139
    %p141 = scmp.ne.s32.totalorder %s129, %s130
    %p142 = scmp.eq.s32.totalorder %s20, 3
    %p143 = por %p141, %p142
    %p145 = scmp.ne.s32.totalorder %s130, %s144
    %p146 = scmp.eq.s32.totalorder %s20, 0
    %p147 = por %p145, %p146
    %s149 = sadd.s32 %s148, 1
    %p152 = scmp.eq.s32.totalorder %s14, 3
    %p153 = scmp.ne.s32.totalorder %s148, %s150
    %p154 = scmp.eq.s32.totalorder %s14, 0
    %p155 = por %p153, %p154
    %p156 = scmp.ne.s32.totalorder %s148, %s150
    %p157 = scmp.eq.s32.totalorder %s19, 3
    %p158 = por %p156, %p157
    %p159 = scmp.ne.s32.totalorder %s150, %s151
    %p160 = scmp.eq.s32.totalorder %s19, 0
    %p161 = por %p159, %p160
    %p162 = scmp.ne.s32.totalorder %s150, %s151
    %p163 = scmp.eq.s32.totalorder %s20, 3
    %p164 = por %p162, %p163
    %p166 = scmp.ne.s32.totalorder %s151, %s165
    %p167 = scmp.eq.s32.totalorder %s20, 0
    %p168 = por %p166, %p167
    %s170 = sadd.s32 %s169, 1
    %p173 = scmp.eq.s32.totalorder %s14, 3
    %p174 = scmp.ne.s32.totalorder %s169, %s171
    %p175 = scmp.eq.s32.totalorder %s14, 0
    %p176 = por %p174, %p175
    %p177 = scmp.ne.s32.totalorder %s169, %s171
    %p178 = scmp.eq.s32.totalorder %s19, 3
    %p179 = por %p177, %p178
    %p180 = scmp.ne.s32.totalorder %s171, %s172
    %p181 = scmp.eq.s32.totalorder %s19, 0
    %p182 = por %p180, %p181
    %p183 = scmp.ne.s32.totalorder %s171, %s172
    %p184 = scmp.eq.s32.totalorder %s20, 3
    %p185 = por %p183, %p184
    %p187 = scmp.ne.s32.totalorder %s172, %s186
    %p188 = scmp.eq.s32.totalorder %s20, 0
    %p189 = por %p187, %p188
    %s191 = sadd.s32 %s190, 1
    %p194 = scmp.eq.s32.totalorder %s14, 3
    %p195 = scmp.ne.s32.totalorder %s190, %s192
    %p196 = scmp.eq.s32.totalorder %s14, 0
    %p197 = por %p195, %p196
    %p198 = scmp.ne.s32.totalorder %s190, %s192
    %p199 = scmp.eq.s32.totalorder %s19, 3
    %p200 = por %p198, %p199
    %p201 = scmp.ne.s32.totalorder %s192, %s193
    %p202 = scmp.eq.s32.totalorder %s19, 0
    %p203 = por %p201, %p202
    %p204 = scmp.ne.s32.totalorder %s192, %s193
    %p205 = scmp.eq.s32.totalorder %s20, 3
    %p206 = por %p204, %p205
    %p208 = scmp.ne.s32.totalorder %s193, %s207
    %p209 = scmp.eq.s32.totalorder %s20, 0
    %p210 = por %p208, %p209
    %s211 = smul.u32 %s21, %s22
    %s212 = smul.u32 %s33, %s29
    %s213 = ssub.s32 %s211, %s212
    %p214 = scmp.eq.s32.totalorder %s213, 0
    %s216 = sadd.s32 %s215, 1
    %s217 = scalar_select %p214, %s215, %s216
    %p220 = pneg %p214
    %p221 = scmp.eq.s32.totalorder %s14, 3
    %p222 = por %p220, %p221
    %p223 = scmp.ne.s32.totalorder %s215, %s218
    %p224 = scmp.eq.s32.totalorder %s14, 0
    %p225 = por %p223, %p224
    %p226 = scmp.ne.s32.totalorder %s215, %s218
    %p227 = scmp.eq.s32.totalorder %s19, 3
    %p228 = por %p226, %p227
    %p229 = scmp.ne.s32.totalorder %s218, %s219
    %p230 = scmp.eq.s32.totalorder %s19, 0
    %p231 = por %p229, %p230
    %p232 = scmp.ne.s32.totalorder %s218, %s219
    %p233 = scmp.eq.s32.totalorder %s20, 3
    %p234 = por %p232, %p233
    %p236 = scmp.ne.s32.totalorder %s219, %s235
    %p237 = scmp.eq.s32.totalorder %s20, 0
    %p238 = por %p236, %p237
    %p239 = scmp.le.s32.totalorder 1, %s14
    %p240 = scmp.lt.s32.totalorder %s14, 5
    %p241 = pnand %p239, %p240
    %p242 = pneg %p241
    // Predicated region
    $region9: #{bottleneck_forward.3} parent=5 // pred_check
      _
    $region10: #{bottleneck_forward.3} parent=5 // pred_check_branch
      %244 = sbr.rel (%p241) target = $region12
    $region11: #{bottleneck_forward.3} parent=5 // pred_region
      %s245 = ssub.s32 %s14, 1
      // Predicated region
      $region13: #{bottleneck_forward.3} parent=11 // pred_check
        %p246 = pneg %p77
      $region14: #{bottleneck_forward.3} parent=11 // pred_check_branch
        %248 = sbr.rel (%p246) target = $region16
      $region15: #{bottleneck_forward.3} parent=11 // pred_region
        _
      $region16: #{bottleneck_forward.3} parent=11 // pred_fallthru
        _
      // Predicated region
      $region17: #{bottleneck_forward.3} parent=11 // pred_check
        %p249 = pneg %p98
      $region18: #{bottleneck_forward.3} parent=11 // pred_check_branch
        %251 = sbr.rel (%p249) target = $region20
      $region19: #{bottleneck_forward.3} parent=11 // pred_region
        _
      $region20: #{bottleneck_forward.3} parent=11 // pred_fallthru
        _
      // Predicated region
      $region21: #{bottleneck_forward.3} parent=11 // pred_check
        %p252 = pneg %p119
      $region22: #{bottleneck_forward.3} parent=11 // pred_check_branch
        %254 = sbr.rel (%p252) target = $region24
      $region23: #{bottleneck_forward.3} parent=11 // pred_region
        _
      $region24: #{bottleneck_forward.3} parent=11 // pred_fallthru
        _
      // Predicated region
      $region25: #{bottleneck_forward.3} parent=11 // pred_check
        %p255 = pneg %p140
      $region26: #{bottleneck_forward.3} parent=11 // pred_check_branch
        %257 = sbr.rel (%p255) target = $region28
      $region27: #{bottleneck_forward.3} parent=11 // pred_region
        _
      $region28: #{bottleneck_forward.3} parent=11 // pred_fallthru
        _
      // Predicated region
      $region29: #{bottleneck_forward.3} parent=11 // pred_check
        %p258 = pneg %p161
      $region30: #{bottleneck_forward.3} parent=11 // pred_check_branch
        %260 = sbr.rel (%p258) target = $region32
      $region31: #{bottleneck_forward.3} parent=11 // pred_region
        _
      $region32: #{bottleneck_forward.3} parent=11 // pred_fallthru
        _
      // Predicated region
      $region33: #{bottleneck_forward.3} parent=11 // pred_check
        %p261 = pneg %p182
      $region34: #{bottleneck_forward.3} parent=11 // pred_check_branch
        %263 = sbr.rel (%p261) target = $region36
      $region35: #{bottleneck_forward.3} parent=11 // pred_region
        _
      $region36: #{bottleneck_forward.3} parent=11 // pred_fallthru
        _
      // Predicated region
      $region37: #{bottleneck_forward.3} parent=11 // pred_check
        %p264 = pneg %p203
      $region38: #{bottleneck_forward.3} parent=11 // pred_check_branch
        %266 = sbr.rel (%p264) target = $region40
      $region39: #{bottleneck_forward.3} parent=11 // pred_region
        _
      $region40: #{bottleneck_forward.3} parent=11 // pred_fallthru
        _
    $region12: #{bottleneck_forward.3} parent=5 // pred_fallthru
      _
    %p267 = scmp.lt.s32.totalorder %s14, 4
    // Predicated region
    $region41: #{bottleneck_forward.3} parent=5 // pred_check
      %p268 = pneg %p267
    $region42: #{bottleneck_forward.3} parent=5 // pred_check_branch
      %270 = sbr.rel (%p268) target = $region44
    $region43: #{bottleneck_forward.3} parent=5 // pred_region
      // Predicated region
      $region45: #{bottleneck_forward.3} parent=43 // pred_check
        %p271 = pneg %p50
      $region46: #{bottleneck_forward.3} parent=43 // pred_check_branch
        %273 = sbr.rel (%p271) target = $region48
      $region47: #{bottleneck_forward.3} parent=43 // pred_region
        %s274 = ssub.s32 1, %s21
        %s275 = smul.u32 %s274, %s22
        %p276 = scmp.lt.s32.totalorder %s275, 1
        %s277 = scalar_select %p276, %s275, 1
        %s278 = smul.addr %s277, 2
        %s279 = smul.addr %s278, 4
        %s280 = scalar_lea.vmem %s0, %s279
        %s281 = ssub.s32 1, %s21
        %s282 = smul.u32 %s281, %s22
      $region48: #{bottleneck_forward.3} parent=43 // pred_fallthru
        _
    $region44: #{bottleneck_forward.3} parent=5 // pred_fallthru
      _
    %p283 = scmp.le.s32.totalorder 1, %s14
    %p284 = scmp.lt.s32.totalorder %s14, 5
    %p285 = pnand %p283, %p284
    %p286 = pneg %p285
    // Predicated region
    $region49: #{bottleneck_forward.3} parent=5 // pred_check
      _
    $region50: #{bottleneck_forward.3} parent=5 // pred_check_branch
      %288 = sbr.rel (%p285) target = $region52
    $region51: #{bottleneck_forward.3} parent=5 // pred_region
      %s289 = ssub.s32 %s14, 1
      %s290 = ssub.s32 1, %s23
      %s291 = smul.u32 %s290, %s24
      %p292 = scmp.lt.s32.totalorder %s291, 1
      %s293 = scalar_select %p292, %s291, 1
      %s294 = smul.addr %s293, 2
      %s295 = smul.addr %s294, 4
      %s296 = scalar_lea.vmem %s0, %s295
      %p297 = pneg %p56
      %p298 = pneg %p53
      %p299 = pneg %p77
      %p300 = pneg %p74
      %p301 = pneg %p98
      %p302 = pneg %p95
      %p303 = pneg %p119
      %p304 = pneg %p116
      %p305 = pneg %p140
      %p306 = pneg %p137
      %p307 = pneg %p161
      %p308 = pneg %p158
      %p309 = pneg %p182
      %p310 = pneg %p179
      %p311 = pneg %p203
      %p312 = pneg %p200
      %p313 = pneg %p231
      %p314 = pneg %p228
      %s315 = smul.u32 %s23, %s24
      %p316 = scmp.lt.s32.totalorder %s315, 1
      %s317 = scalar_select %p316, %s315, 1
      %s318 = smul.addr %s317, 2
      %s319 = smul.addr %s318, 8
      %s320 = scalar_lea.vmem %s8, %s319
      %s321 = ssub.s32 1, %s23
      %s322 = smul.u32 %s321, %s24
      %p323 = scmp.lt.s32.totalorder %s322, 1
      %s324 = scalar_select %p323, %s322, 1
      %s325 = smul.addr %s324, 2
      %s326 = smul.addr %s325, 4
      %s327 = scalar_lea.vmem %s0, %s326
      %s328 = ssub.s32 1, %s23
      %s329 = smul.u32 %s328, %s24
      %s330 = smul.u32 %s23, %s24
      %p331 = scmp.lt.s32.totalorder %s330, 1
      %s332 = scalar_select %p331, %s330, 1
      %s333 = smul.addr %s332, 2
      %s334 = smul.addr %s333, 8
      %s335 = scalar_lea.vmem %s8, %s334
      %s336 = smul.u32 %s23, %s24
      %p337 = scmp.eq.s32.totalorder %s23, 0
      // Predicated region
      $region53: #{bottleneck_forward.3} parent=51 // pred_check
        %p338 = pneg %p337
      $region54: #{bottleneck_forward.3} parent=51 // pred_check_branch
        %340 = sbr.rel (%p338) target = $region56
      $region55: #{bottleneck_forward.3} parent=51 // pred_region
        %v341 = vld [vmem:[%s327] sm:$0xff]
        %v342 = vld [vmem:[%s1] sm:$0xf]
        %344 = vset.pattern.permute.xlu0 0
        %345 = vperm.xlu0 %344, %v342
        %v346 = vpop.permute.xlu0 %345
        %v348 = vunpack.c.l.s4 839922192
        %v349 = vunpack.c.0.s8 %v348
        %v350 = vperm.slane %v346, %v349
        %v352 = vsub.f32 %v341, %v350
        %v353 = vld [vmem:[%s2] sm:$0xf]
        %355 = vset.pattern.permute.xlu0 0
        %356 = vperm.xlu0 %355, %v353
        %v357 = vpop.permute.xlu0 %356
        %v359 = vunpack.c.l.s4 839922192
        %v360 = vunpack.c.0.s8 %v359
        %v361 = vperm.slane %v357, %v360
        %v363 = vmul.f32 %v352, %v361
        %v364 = vmax.f32 %v363, 0.0
        %v365 = vld [vmem:[%s3] sm:$0xff]
        %v366 = vld [vmem:[%s4] sm:$0xff]
        %368 = vset.pattern.permute.xlu0 0
        %369 = vperm.xlu0 %368, %v366
        %v370 = vpop.permute.xlu0 %369
        %373 = vst [vmem:[#allocation1] ss:$2 sm:$0xff] %v364
        %v374 = vld.sshfl [vmem:[#allocation1] sm:$0xff pattern:$0x75316420]
        %v375 = vld.sshfl [vmem:[#allocation1 + $0x8] sm:$0xff pattern:$0x75316420]
        %vm376 = vcmask 31744
        %v378 = vsel %vm376, %v365, 0
        %vm380 = vcmask 1043456
        %v381 = vsel %vm380, %v374, 0
        %v383 = vsel %vm380, %v375, 0
        %385 = vmatpush.msra.mxu0 0.0
        %386 = vmatpush.msra.mxu0 0.0
        %387 = vmatpush.msra.mxu0 0.0
        %388 = vmatpush.msra.mxu0 0.0
        %389 = vmatpush.msra.mxu0 0.0
        %390 = vmatpush.msra.mxu0 0.0
        %391 = vmatpush.msra.mxu0 0.0
        %392 = vmatpush.msra.mxu0 0.0
        %393 = vmatpush.msra.mxu0 0.0
        %394 = vmatpush.msra.mxu0 0.0
        %395 = vmatpush.msra.mxu0 0.0
        %396 = vmatpush.msra.mxu0 0.0
        %397 = vmatpush.msra.mxu0 0.0
        %398 = vmatpush.msra.mxu0 0.0
        %399 = vmatpush.msra.mxu0 0.0
        %400 = vmatpush.msra.mxu0 %v381
        %401 = vmatmul.f32.gmra.mxu0 %v378
        %v402 = vpop.f32.mrf.mxu0
        %v403 = vadd.f32 %v370, %v402
        %404 = vdwg.mxu0
        %405 = vmatpush.msra.mxu0 0.0
        %406 = vmatpush.msra.mxu0 0.0
        %407 = vmatpush.msra.mxu0 0.0
        %408 = vmatpush.msra.mxu0 0.0
        %409 = vmatpush.msra.mxu0 0.0
        %410 = vmatpush.msra.mxu0 0.0
        %411 = vmatpush.msra.mxu0 0.0
        %412 = vmatpush.msra.mxu0 0.0
        %413 = vmatpush.msra.mxu0 0.0
        %414 = vmatpush.msra.mxu0 0.0
        %415 = vmatpush.msra.mxu0 0.0
        %416 = vmatpush.msra.mxu0 0.0
        %417 = vmatpush.msra.mxu0 0.0
        %418 = vmatpush.msra.mxu0 0.0
        %419 = vmatpush.msra.mxu0 0.0
        %420 = vmatpush.msra.mxu0 %v383
        %421 = vmatmul.f32.gmra.mxu0 %v378
        %v422 = vpop.f32.mrf.mxu0
        %v423 = vadd.f32 %v370, %v422
        %424 = vdwg.mxu0
        %s425 = smul.u32 %s24, 2
        %s426 = smul.addr %s425, 8
        %s427 = scalar_lea.vmem [#allocation2], %s426
        %428 = vst [vmem:[%s427] sm:$0xff] %v403
        %429 = vst [vmem:[%s427 + $0x8] sm:$0xff] %v423
        %p430 = scmp.eq.s32.totalorder %s24, 0
        // Predicated region
        $region57: #{bottleneck_forward.3} parent=55 // pred_check
          %p431 = pneg %p430
        $region58: #{bottleneck_forward.3} parent=55 // pred_check_branch
          %433 = sbr.rel (%p431) target = $region60
        $region59: #{bottleneck_forward.3} parent=55 // pred_region
          %vm434 = vcmask 7168
          %435 = vst.msk [vmem:[#allocation5] sm:$0xff] %vm434, %v403
          %436 = vst.msk [vmem:[#allocation3] sm:$0xff] %vm434, 0.0
          %437 = vst.msk [vmem:[#allocation4] sm:$0xff] %vm434, 0.0
        $region60: #{bottleneck_forward.3} parent=55 // pred_fallthru
          _
        %v438 = vld [vmem:[#allocation5] sm:$0xff]
        %440 = vset.pattern.permute.xlu0 0
        %441 = vperm.xlu0 %440, %v438
        %v442 = vpop.permute.xlu0 %441
        %v444 = vsub.f32 %v403, %v442
        %v445 = vsub.f32 %v423, %v442
        %v446 = vld [vmem:[#allocation3] sm:$0xff]
        %v447 = vadd.f32 %v444, %v445
        %448 = vadd.xlane.f32.xlu0 %v447
        %v449 = vpop.xlane.xlu0 %448
        %v450 = vadd.f32 %v446, %v449
        %vm451 = vcmask 7168
        %452 = vst.msk [vmem:[#allocation3] sm:$0xff] %vm451, %v450
        %v453 = vld [vmem:[#allocation4] sm:$0xff]
        %v454 = vmul.f32 %v444, %v444
        %v455 = vmul.f32 %v445, %v445
        %v456 = vadd.f32 %v454, %v455
        %457 = vadd.xlane.f32.xlu0 %v456
        %v458 = vpop.xlane.xlu0 %457
        %v459 = vadd.f32 %v453, %v458
        %460 = vst.msk [vmem:[#allocation4] sm:$0xff] %vm451, %v459
        %p461 = scmp.eq.s32.totalorder %s24, 1
        // Predicated region
        $region61: #{bottleneck_forward.3} parent=55 // pred_check
          %p462 = pneg %p461
        $region62: #{bottleneck_forward.3} parent=55 // pred_check_branch
          %464 = sbr.rel (%p462) target = $region64
        $region63: #{bottleneck_forward.3} parent=55 // pred_region
          %v465 = vld [vmem:[#allocation3] sm:$0xff]
          %v466 = vrcp.pop 512.0
          %v467 = vmul.f32 512.0, %v466
          %v468 = vsub.f32 1.0, %v467
          %v469 = vmul.f32 %v466, %v468
          %v470 = vadd.f32 %v466, %v469
          %vm471 = vweird.f32 %v466
          %v472 = vsel %vm471, %v466, %v470
          %v473 = vmul.f32 %v465, %v472
          %v474 = vld [vmem:[#allocation4] sm:$0xff]
          %v475 = vmul.f32 %v474, %v472
          %v476 = vmul.f32 %v473, %v473
          %v477 = vsub.f32 %v475, %v476
          %v478 = vmax.f32 %v477, 0.0
          %v479 = vld [vmem:[#allocation5] sm:$0xff]
          %v480 = vadd.f32 %v479, %v473
          %481 = vst.msk [vmem:[#allocation6] sm:$0xff] %vm451, %v480
          %v482 = vadd.f32 %v478, 1e-05
          %v483 = vrsqrt.pop %v482
          %v484 = vmul.f32 %v483, %v482
          %v485 = vmul.f32 %v484, %v483
          %v486 = vmul.f32 0.5, %v485
          %v487 = vsub.f32 1.5, %v486
          %v488 = vmul.f32 %v483, %v487
          %vm489 = vweird.f32 %v482
          %vm490 = vweird.f32 %v483
          %vm491 = vmor %vm489, %vm490
          %v492 = vsel %vm491, %v483, %v488
          %493 = vst.msk [vmem:[#allocation7] sm:$0xff] %vm451, %v492
        $region64: #{bottleneck_forward.3} parent=55 // pred_fallthru
          _
      $region56: #{bottleneck_forward.3} parent=51 // pred_fallthru
        _
      %p494 = scmp.eq.s32.totalorder %s23, 1
      // Predicated region
      $region65: #{bottleneck_forward.3} parent=51 // pred_check
        %p495 = pneg %p494
      $region66: #{bottleneck_forward.3} parent=51 // pred_check_branch
        %497 = sbr.rel (%p495) target = $region68
      $region67: #{bottleneck_forward.3} parent=51 // pred_region
        %s498 = smul.u32 %s24, 2
        %s499 = smul.addr %s498, 8
        %s500 = scalar_lea.vmem [#allocation2], %s499
        %v501 = vld [vmem:[%s500] sm:$0xff]
        %v502 = vld [vmem:[%s500 + $0x8] sm:$0xff]
        %v503 = vld [vmem:[#allocation6] sm:$0xff]
        %505 = vset.pattern.permute.xlu0 0
        %506 = vperm.xlu0 %505, %v503
        %v507 = vpop.permute.xlu0 %506
        %v509 = vsub.f32 %v501, %v507
        %v510 = vsub.f32 %v502, %v507
        %v511 = vld [vmem:[#allocation7] sm:$0xff]
        %513 = vset.pattern.permute.xlu0 0
        %514 = vperm.xlu0 %513, %v511
        %v515 = vpop.permute.xlu0 %514
        %v517 = vmul.f32 %v509, %v515
        %v518 = vmul.f32 %v510, %v515
        %v519 = vmax.f32 %v517, 0.0
        %v520 = vmax.f32 %v518, 0.0
        %521 = vrot.lane.b32.xlu0 %v519, 17
        %v522 = vpop.permute.xlu0 %521
        %523 = vrot.lane.b32.xlu0 %v520, 17
        %v524 = vpop.permute.xlu0 %523
        %v525 = vlaneseq
        %v526 = vand.u32 %v525, 127
        %vm527 = vcmp.lt.s32.totalorder %v526, 17
        %v528 = vsel %vm527, %v522, %v524
        %v529 = vsel %vm527, %v524, %v522
        %v530 = vld [vmem:[%s7] ss:$8 sm:$0x3]
        %v532 = vperm.slane %v530, 0
        %v533 = vperm.slane %v530, 1
        %v536 = vmul.f32 %v529, %v532
        %v537 = vmul.f32 %v528, %v533
        %538 = vrot.lane.b32.xlu0 %v519, 16
        %v539 = vpop.permute.xlu0 %538
        %540 = vrot.lane.b32.xlu0 %v520, 16
        %v541 = vpop.permute.xlu0 %540
        %vm542 = vcmp.lt.s32.totalorder %v526, 16
        %v543 = vsel %vm542, %v539, %v541
        %v544 = vsel %vm542, %v541, %v539
        %s545 = scalar_lea.vmem %s7, 1
        %v546 = vld [vmem:[%s545] ss:$8 sm:$0x3]
        %v548 = vperm.slane %v546, 0
        %v549 = vperm.slane %v546, 1
        %v552 = vmul.f32 %v544, %v548
        %v553 = vmul.f32 %v543, %v549
        %554 = vrot.lane.b32.xlu0 %v519, 15
        %v555 = vpop.permute.xlu0 %554
        %556 = vrot.lane.b32.xlu0 %v520, 15
        %v557 = vpop.permute.xlu0 %556
        %vm558 = vcmp.lt.s32.totalorder %v526, 15
        %v559 = vsel %vm558, %v555, %v557
        %v560 = vsel %vm558, %v557, %v555
        %s561 = scalar_lea.vmem %s7, 2
        %v562 = vld [vmem:[%s561] ss:$8 sm:$0x3]
        %v564 = vperm.slane %v562, 0
        %v565 = vperm.slane %v562, 1
        %v568 = vmul.f32 %v560, %v564
        %v569 = vmul.f32 %v559, %v565
        %570 = vrot.lane.b32.xlu0 %v519, 1
        %v571 = vpop.permute.xlu0 %570
        %572 = vrot.lane.b32.xlu0 %v520, 1
        %v573 = vpop.permute.xlu0 %572
        %vm574 = vcmp.lt.s32.totalorder %v526, 1
        %v575 = vsel %vm574, %v571, %v573
        %v576 = vsel %vm574, %v573, %v571
        %s577 = scalar_lea.vmem %s7, 3
        %v578 = vld [vmem:[%s577] ss:$8 sm:$0x3]
        %v580 = vperm.slane %v578, 0
        %v581 = vperm.slane %v578, 1
        %v584 = vmul.f32 %v576, %v580
        %v585 = vmul.f32 %v575, %v581
        %586 = vrot.lane.b32.xlu0 %v519, 127
        %v587 = vpop.permute.xlu0 %586
        %588 = vrot.lane.b32.xlu0 %v520, 127
        %v589 = vpop.permute.xlu0 %588
        %vm590 = vcmp.lt.s32.totalorder %v526, 127
        %v591 = vsel %vm590, %v587, %v589
        %v592 = vsel %vm590, %v589, %v587
        %s593 = scalar_lea.vmem %s7, 5
        %v594 = vld [vmem:[%s593] ss:$8 sm:$0x3]
        %v596 = vperm.slane %v594, 0
        %v597 = vperm.slane %v594, 1
        %v600 = vmul.f32 %v591, %v596
        %v601 = vmul.f32 %v592, %v597
        %602 = vrot.lane.b32.xlu0 %v519, 113
        %v603 = vpop.permute.xlu0 %602
        %604 = vrot.lane.b32.xlu0 %v520, 113
        %v605 = vpop.permute.xlu0 %604
        %vm606 = vcmp.lt.s32.totalorder %v526, 113
        %v607 = vsel %vm606, %v603, %v605
        %v608 = vsel %vm606, %v605, %v603
        %s609 = scalar_lea.vmem %s7, 6
        %v610 = vld [vmem:[%s609] ss:$8 sm:$0x3]
        %v612 = vperm.slane %v610, 0
        %v613 = vperm.slane %v610, 1
        %v616 = vmul.f32 %v607, %v612
        %v617 = vmul.f32 %v608, %v613
        %618 = vrot.lane.b32.xlu0 %v519, 112
        %v619 = vpop.permute.xlu0 %618
        %620 = vrot.lane.b32.xlu0 %v520, 112
        %v621 = vpop.permute.xlu0 %620
        %vm622 = vcmp.lt.s32.totalorder %v526, 112
        %v623 = vsel %vm622, %v619, %v621
        %v624 = vsel %vm622, %v621, %v619
        %s625 = scalar_lea.vmem %s7, 7
        %v626 = vld [vmem:[%s625] ss:$8 sm:$0x3]
        %v628 = vperm.slane %v626, 0
        %v629 = vperm.slane %v626, 1
        %v632 = vmul.f32 %v623, %v628
        %v633 = vmul.f32 %v624, %v629
        %634 = vrot.lane.b32.xlu0 %v519, 111
        %v635 = vpop.permute.xlu0 %634
        %636 = vrot.lane.b32.xlu0 %v520, 111
        %v637 = vpop.permute.xlu0 %636
        %vm638 = vcmp.lt.s32.totalorder %v526, 111
        %v639 = vsel %vm638, %v635, %v637
        %v640 = vsel %vm638, %v637, %v635
        %s641 = scalar_lea.vmem %s7, 16
        %v642 = vld [vmem:[%s641] ss:$8 sm:$0x3]
        %v644 = vperm.slane %v642, 0
        %v645 = vperm.slane %v642, 1
        %v648 = vmul.f32 %v639, %v644
        %v649 = vmul.f32 %v640, %v645
        %v650 = vld [vmem:[%s5] sm:$0x1f]
        %v651 = vld [vmem:[%s6] sm:$0x1f]
        %653 = vset.pattern.permute.xlu0 0
        %654 = vperm.xlu0 %653, %v651
        %v655 = vpop.permute.xlu0 %654
        %vm657 = vcmask 588800
        %v659 = vsel %vm657, %v650, 0
        %661 = vmatpush.msra.mxu0 0.0
        %662 = vmatpush.msra.mxu0 0.0
        %663 = vmatpush.msra.mxu0 0.0
        %664 = vmatpush.msra.mxu0 0.0
        %665 = vmatpush.msra.mxu0 0.0
        %666 = vmatpush.msra.mxu0 0.0
        %667 = vmatpush.msra.mxu0 0.0
        %668 = vmatpush.msra.mxu0 %v648
        %669 = vmatpush.msra.mxu0 %v632
        %670 = vmatpush.msra.mxu0 %v616
        %671 = vmatpush.msra.mxu0 %v600
        %672 = vmatpush.msra.mxu0 %v519
        %673 = vmatpush.msra.mxu0 %v584
        %674 = vmatpush.msra.mxu0 %v568
        %675 = vmatpush.msra.mxu0 %v552
        %676 = vmatpush.msra.mxu0 %v536
        %677 = vmatmul.f32.gmra.mxu0 %v659
        %v678 = vpop.f32.mrf.mxu0
        %v679 = vadd.f32 %v655, %v678
        %680 = vdwg.mxu0
        %681 = vmatpush.msra.mxu0 0.0
        %682 = vmatpush.msra.mxu0 0.0
        %683 = vmatpush.msra.mxu0 0.0
        %684 = vmatpush.msra.mxu0 0.0
        %685 = vmatpush.msra.mxu0 0.0
        %686 = vmatpush.msra.mxu0 0.0
        %687 = vmatpush.msra.mxu0 0.0
        %688 = vmatpush.msra.mxu0 %v649
        %689 = vmatpush.msra.mxu0 %v633
        %690 = vmatpush.msra.mxu0 %v617
        %691 = vmatpush.msra.mxu0 %v601
        %692 = vmatpush.msra.mxu0 %v520
        %693 = vmatpush.msra.mxu0 %v585
        %694 = vmatpush.msra.mxu0 %v569
        %695 = vmatpush.msra.mxu0 %v553
        %696 = vmatpush.msra.mxu0 %v537
        %697 = vmatmul.f32.gmra.mxu0 %v659
        %v698 = vpop.f32.mrf.mxu0
        %v699 = vadd.f32 %v655, %v698
        %700 = vdwg.mxu0
        %701 = vst [vmem:[%s335] sm:$0x1f] %v679
        %702 = vst [vmem:[%s335 + $0x8] sm:$0x1f] %v699
      $region68: #{bottleneck_forward.3} parent=51 // pred_fallthru
        _
      %s703 = smul.u32 %s23, %s24
      %p704 = scmp.lt.s32.totalorder %s703, 1
      %s705 = scalar_select %p704, %s703, 1
      %s706 = smul.addr %s705, 2
      %s707 = smul.addr %s706, 8
      %s708 = scalar_lea.vmem %s8, %s707
      // Predicated region
      $region69: #{bottleneck_forward.3} parent=51 // pred_check
        %p709 = pneg %p228
      $region70: #{bottleneck_forward.3} parent=51 // pred_check_branch
        %711 = sbr.rel (%p709) target = $region72
      $region71: #{bottleneck_forward.3} parent=51 // pred_region
        %s712 = smul.u32 %s23, %s24
      $region72: #{bottleneck_forward.3} parent=51 // pred_fallthru
        _
    $region52: #{bottleneck_forward.3} parent=5 // pred_fallthru
      _
    %p713 = scmp.le.s32.totalorder 2, %s14
    // Predicated region
    $region73: #{bottleneck_forward.3} parent=5 // pred_check
      %p714 = pneg %p713
    $region74: #{bottleneck_forward.3} parent=5 // pred_check_branch
      %716 = sbr.rel (%p714) target = $region76
    $region75: #{bottleneck_forward.3} parent=5 // pred_region
      %s717 = ssub.s32 %s14, 2
      // Predicated region
      $region77: #{bottleneck_forward.3} parent=75 // pred_check
        %p718 = pneg %p234
      $region78: #{bottleneck_forward.3} parent=75 // pred_check_branch
        %720 = sbr.rel (%p718) target = $region80
      $region79: #{bottleneck_forward.3} parent=75 // pred_region
        %s721 = smul.u32 %s25, %s26
        %p722 = scmp.lt.s32.totalorder %s721, 1
        %s723 = scalar_select %p722, %s721, 1
        %s724 = smul.addr %s723, 2
        %s725 = smul.addr %s724, 8
        %s726 = scalar_lea.vmem %s8, %s725
      $region80: #{bottleneck_forward.3} parent=75 // pred_fallthru
        _
    $region76: #{bottleneck_forward.3} parent=5 // pred_fallthru
      _
  $region6: #{bottleneck_forward.3} parent=0 // loop_footer
    %s18 = sadd.s32 1, %s14
  $region7: #{bottleneck_forward.3} parent=0 // loop_footer_branch
    %13 = sbr.rel target = $region3
  $region8: #{bottleneck_forward.3} parent=0 // loop_exit
    _

</llo_original>
